<compile_context>
chip_gen: v7x
topology: tpu7x:2x2x1
jax: 0.10.0
libtpu: 0.0.40
codegen_flags: <defaults>
</compile_context>

<pallas_src>
import functools

import jax
import jax.numpy as jnp
from jax import lax
from jax.experimental import pallas as pl
from jax.experimental.pallas import tpu as pltpu

# MXU inputs are cast to bf16 (v6e/v7x native, supported on v5e); bias adds, gate
# nonlinearities, exp/tanh and all accumulations stay in f32.
MXU_DTYPE = jnp.bfloat16


# ----------------------------------------------------------------------------
# 1. Image tower: 3x3 'same' conv (banded matmuls) + ReLU + global average pool
# ----------------------------------------------------------------------------
def _tower_kernel(xps_ref, wband_ref, btile_ref, pool_ref, o_ref):
    # xps_ref:   (3, 1, H, (W+2)*C) bf16  dy-shifted padded rows of ONE image
    # wband_ref: (3, (W+2)*C, W*F)  bf16  banded conv weights, one slab per dy
    # btile_ref: (1, W*F)           f32   conv bias tiled over x
    # pool_ref:  (W*F, F)           bf16  x-pool (tiled identity / (H*W))
    # o_ref:     (1, 1, F)          bf16  this image's GAP feature
    acc = jnp.dot(xps_ref[0, 0], wband_ref[0], preferred_element_type=jnp.float32)
    acc = acc + jnp.dot(xps_ref[1, 0], wband_ref[1],
                        preferred_element_type=jnp.float32)
    acc = acc + jnp.dot(xps_ref[2, 0], wband_ref[2],
                        preferred_element_type=jnp.float32)        # (H, W*F) f32
    act = jnp.maximum(acc + btile_ref[...], 0.0)                   # bias + ReLU
    pooled = jnp.sum(act, axis=0, keepdims=True)                   # (1, W*F) sum y
    o_ref[0] = jnp.dot(pooled.astype(MXU_DTYPE), pool_ref[...],
                       preferred_element_type=jnp.float32).astype(o_ref.dtype)


def image_tower_forward(tower_prepped, x_nhwc):
    """One grid step per image ("parallel"): v7x uses both TCs, v5e/v6e pipeline
    the per-image DMA with the banded matmuls.  The three dy-shifted row views
    are built once in glue so every in-kernel slice is (8,128)-tile aligned."""
    n, h, w, c = x_nhwc.shape
    f = tower_prepped["pool"].shape[-1]

    xp = jnp.pad(x_nhwc, ((0, 0), (1, 1), (1, 1), (0, 0)))
    xp = xp.reshape(n, h + 2, (w + 2) * c)
    xps = jnp.stack([xp[:, dy:dy + h, :] for dy in range(3)], axis=0)
    xps = xps.astype(MXU_DTYPE)                                    # (3, N, H, (W+2)C)

    feats = pl.pallas_call(
        _tower_kernel,
        out_shape=jax.ShapeDtypeStruct((n, 1, f), MXU_DTYPE),
        grid=(n,),
        in_specs=[
            pl.BlockSpec((3, 1, h, (w + 2) * c), lambda i: (0, i, 0, 0)),
            pl.BlockSpec((3, (w + 2) * c, w * f), lambda i: (0, 0, 0)),
            pl.BlockSpec((1, w * f), lambda i: (0, 0)),
            pl.BlockSpec((w * f, f), lambda i: (0, 0)),
        ],
        out_specs=pl.BlockSpec((1, 1, f), lambda i: (i, 0, 0)),
        compiler_params=pltpu.CompilerParams(
            dimension_semantics=("parallel",),
            # keep the full W*F output slab intact as the model scales (v5e's
            # default scoped VMEM is only 16 MiB).
            vmem_limit_bytes=32 * 1024 * 1024),
    )(xps, tower_prepped["wband"], tower_prepped["btile"], tower_prepped["pool"])
    return feats.reshape(n, f)                                     # (N, F) bf16


# ----------------------------------------------------------------------------
# 2. Fused gaussian_lstm: input projections + recurrence + heads, per branch
# ----------------------------------------------------------------------------
def _make_lstm_branch_kernel(dt, v, hd):
    def kernel(feats_ref, we_ref, be_ref, wih_ref, bg_ref, whh_ref,
               whead_ref, bhead_ref, head_ref, xg_sc, h_sc):
        # ---- phase A: embed + input-to-gates for ALL timesteps (one matmul pair)
        x = feats_ref[...]                                   # (dt*V, In) bf16
        emb = (jnp.dot(x, we_ref[0], preferred_element_type=jnp.float32)
               + be_ref[0])                                  # (dt*V, hd) f32
        xg_sc[...] = (jnp.dot(emb.astype(MXU_DTYPE), wih_ref[0],
                              preferred_element_type=jnp.float32)
                      + bg_ref[0])                           # (dt*V, 4*hd) f32

        whh = whh_ref[0]                                     # (hd, 4*hd) bf16

        # ---- phase B: serial recurrence, fully in-kernel (no per-step grid
        # overhead).  ONE matmul per step; nonlinearities on the full gate vreg.
        def step(t, carry):
            h, c = carry                                     # (V, hd) f32
            gates = (xg_sc[pl.ds(t * v, v), :]
                     + jnp.dot(h.astype(MXU_DTYPE), whh,
                               preferred_element_type=jnp.float32))   # (V, 4*hd)
            lane = lax.broadcasted_iota(jnp.int32, gates.shape, 1)
            is_g = (lane >= 2 * hd) & (lane < 3 * hd)        # tanh lanes (gate g)
            act = jnp.where(is_g, jnp.tanh(gates), jax.nn.sigmoid(gates))
            i_g = act[:, 0 * hd:1 * hd]                      # PyTorch order i,f,g,o
            f_g = act[:, 1 * hd:2 * hd]
            g_g = act[:, 2 * hd:3 * hd]
            o_g = act[:, 3 * hd:4 * hd]
            c_new = f_g * c + i_g * g_g
            h_new = o_g * jnp.tanh(c_new)
            h_sc[pl.ds(t * v, v), :] = h_new
            return h_new, c_new

        # h/c re-zeroed here (loop entry), per grid step / branch: the prior
        # branch reusing all dt steps and dropping its last output stays correct
        # because the recurrence is strictly causal.
        zero = jnp.zeros((v, hd), jnp.float32)
        lax.fori_loop(0, dt, step, (zero, zero), unroll=True)

        # ---- phase C: mu||logvar heads for all dt steps, one lane-packed matmul
        head = (jnp.dot(h_sc[...].astype(MXU_DTYPE), whead_ref[0],
                        preferred_element_type=jnp.float32)
                + bhead_ref[0])                              # (dt*V, 2*d) f32
        head_ref[0] = head

    return kernel


def _reparam_kl_kernel(hpost_ref, hprior_ref, eps_ref, z_ref, kl_ref, *, d):
    post = hpost_ref[...]                                    # (tp*V, 2*d)
    prior = hprior_ref[...]
    mu1, lv1 = post[:, :d], post[:, d:]                      # posterior
    mu2, lv2 = prior[:, :d], prior[:, d:]                    # prior
    # reparameterize (posterior): z = eps * exp(0.5*logvar) + mu
    z_ref[...] = eps_ref[...] * jnp.exp(0.5 * lv1) + mu1
    # kl_criterion, rewritten in log-space (same value, 2 exps, no log / divide)
    kld = (0.5 * (lv2 - lv1)
           + 0.5 * jnp.exp(lv1 - lv2)
           + 0.5 * (mu1 - mu2) ** 2 * jnp.exp(-lv2)
           - 0.5)
    kl_ref[0] = jnp.mean(kld)                                # matches kld.mean()


def dual_gaussian_lstm_forward(stacked, feats_flat, dt, v, key):
    """Posterior (branch 0) and prior (branch 1) gaussian_lstm forwards in one
    pallas_call.  Posterior sees all dt steps (dt == true_dt -> outputs [1:]);
    the prior sees feats[:dt-1]; since the LSTM is causal both share the same
    dt-step recurrence and the prior's extra last step is simply dropped."""
    n, in_dim = feats_flat.shape
    hd = stacked["we"].shape[-1]
    d2 = stacked["whead"].shape[-1]
    d = d2 // 2
    tp = dt - 1

    kernel = _make_lstm_branch_kernel(dt, v, hd)
    head_all = pl.pallas_call(
        kernel,
        out_shape=jax.ShapeDtypeStruct((2, n, d2), jnp.float32),
        grid=(2,),
        in_specs=[
            pl.BlockSpec((n, in_dim), lambda s: (0, 0)),         # shared feats
            pl.BlockSpec((1, in_dim, hd), lambda s: (s, 0, 0)),  # we
            pl.BlockSpec((1, 1, hd), lambda s: (s, 0, 0)),       # be
            pl.BlockSpec((1, hd, 4 * hd), lambda s: (s, 0, 0)),  # wih
            pl.BlockSpec((1, 1, 4 * hd), lambda s: (s, 0, 0)),   # bih + bhh
            pl.BlockSpec((1, hd, 4 * hd), lambda s: (s, 0, 0)),  # whh
            pl.BlockSpec((1, hd, d2), lambda s: (s, 0, 0)),      # wmu || wlv
            pl.BlockSpec((1, 1, d2), lambda s: (s, 0, 0)),       # bmu || blv
        ],
        out_specs=pl.BlockSpec((1, n, d2), lambda s: (s, 0, 0)),
        scratch_shapes=[pltpu.VMEM((n, 4 * hd), jnp.float32),    # xg (all steps)
                        pltpu.VMEM((n, hd), jnp.float32)],       # h  (all steps)
        compiler_params=pltpu.CompilerParams(
            dimension_semantics=("parallel",)),
    )(feats_flat, stacked["we"], stacked["be"], stacked["wih"], stacked["bg"],
      stacked["whh"], stacked["whead"], stacked["bhead"])

    # posterior: dt == true_dt -> h_in[1:]; prior: first dt-1 steps (causal).
    head_post = head_all[0, v:]                              # (tp*V, 2*d)
    head_prior = head_all[1, :tp * v]                        # (tp*V, 2*d)

    k_eps, k_last = jax.random.split(key)
    eps = jax.random.normal(k_eps, (tp * v, d), jnp.float32)

    z_flat, kl = pl.pallas_call(
        functools.partial(_reparam_kl_kernel, d=d),
        out_shape=(jax.ShapeDtypeStruct((tp * v, d), jnp.float32),
                   jax.ShapeDtypeStruct((1,), jnp.float32)),
        grid=(1,),
        in_specs=[pl.BlockSpec((tp * v, d2), lambda i: (0, 0)),
                  pl.BlockSpec((tp * v, d2), lambda i: (0, 0)),
                  pl.BlockSpec((tp * v, d), lambda i: (0, 0))],
        out_specs=(pl.BlockSpec((tp * v, d), lambda i: (0, 0)),
                   pl.BlockSpec((1,), lambda i: (0,), memory_space=pltpu.SMEM)),
    )(head_post, head_prior, eps)

    mu = head_post[:, :d].reshape(tp, v, d)
    last = jax.random.normal(k_last, (1, v, d), jnp.float32)
    z_t = jnp.concatenate([z_flat.reshape(tp, v, d), last], axis=0)
    return z_t, kl[0], mu


# ----------------------------------------------------------------------------
# Parameter prep (run ONCE, off the jitted forward path)
# ----------------------------------------------------------------------------
def _prep_tower_params(tower, h, w):
    wconv = tower["wconv"]                                   # (3, 3, C, F)
    bconv = tower["bconv"]                                   # (F,)
    c, f = wconv.shape[2], wconv.shape[3]
    # banded weights: contraction over (dx, c) becomes one dense matmul per dy.
    wtap = wconv.reshape(3, 3 * c, f)
    wband = jnp.zeros((3, (w + 2) * c, w * f), jnp.float32)
    for xo in range(w):
        wband = wband.at[:, xo * c:(xo + 3) * c, xo * f:(xo + 1) * f].set(wtap)
    return dict(
        wband=wband.astype(MXU_DTYPE),
        btile=jnp.tile(bconv.reshape(1, f), (1, w)),                 # (1, W*F)
        pool=(jnp.tile(jnp.eye(f, dtype=jnp.float32), (w, 1))
              / (h * w)).astype(MXU_DTYPE),                          # (W*F, F)
    )


def _prep_lstm_branch_params(post, prior):
    """Stack posterior/prior params on a leading branch axis; pre-sum bih+bhh;
    lane-pack the mu/logvar heads into one (hd, 2*d) matmul; bf16 weights."""
    stack = lambda name: jnp.stack([post[name], prior[name]], axis=0)
    return dict(
        we=stack("we").astype(MXU_DTYPE),                    # (2, In, hd)
        be=stack("be"),                                      # (2, 1, hd)
        wih=stack("wih").astype(MXU_DTYPE),                  # (2, hd, 4*hd)
        bg=stack("bih") + stack("bhh"),                      # (2, 1, 4*hd)
        whh=stack("whh").astype(MXU_DTYPE),                  # (2, hd, 4*hd)
        whead=jnp.concatenate([stack("wmu"), stack("wlv")],
                              axis=-1).astype(MXU_DTYPE),    # (2, hd, 2*d)
        bhead=jnp.concatenate([stack("bmu"), stack("blv")], axis=-1),  # (2, 1, 2*d)
    )


def prepare_params(params, image_shape):
    dt, v, o, c, h, w = image_shape
    return dict(
        tower=_prep_tower_params(params["tower"], h, w),
        lstm=_prep_lstm_branch_params(params["posterior"], params["prior"]),
    )


# ----------------------------------------------------------------------------
# Parameter init (synthetic, deterministic)
# ----------------------------------------------------------------------------
def init_gaussian_lstm_params(key, in_dim, hid, out):
    ks = jax.random.split(key, 7)
    s = 0.1
    return dict(
        we=jax.random.normal(ks[0], (in_dim, hid), jnp.float32) * s,
        be=jnp.zeros((1, hid), jnp.float32),
        wih=jax.random.normal(ks[1], (hid, 4 * hid), jnp.float32) * s,
        whh=jax.random.normal(ks[2], (hid, 4 * hid), jnp.float32) * s,
        bih=jax.random.normal(ks[3], (1, 4 * hid), jnp.float32) * s,
        bhh=jax.random.normal(ks[4], (1, 4 * hid), jnp.float32) * s,
        wmu=jax.random.normal(ks[5], (hid, out), jnp.float32) * s,
        bmu=jnp.zeros((1, out), jnp.float32),
        wlv=jax.random.normal(ks[6], (hid, out), jnp.float32) * s,
        blv=jnp.zeros((1, out), jnp.float32),
    )


def init_params(key, in_channels, feat_dim, out_dim):
    k_tower, k_post, k_prior = jax.random.split(key, 3)
    return dict(
        tower=dict(
            wconv=jax.random.normal(k_tower, (3, 3, in_channels, feat_dim),
                                    jnp.float32) * 0.1,
            bconv=jnp.zeros((feat_dim,), jnp.float32)),
        posterior=init_gaussian_lstm_params(k_post, feat_dim, out_dim, out_dim),
        prior=init_gaussian_lstm_params(k_prior, feat_dim, out_dim, out_dim),
    )


# ----------------------------------------------------------------------------
# ImageLearnedPrior.forward
# ----------------------------------------------------------------------------
@jax.jit
def image_learned_prior_forward(prepped, image, key):
    """image: (dt, V, o, C, H, W) float32 (PyTorch NCHW per frame, o == 1)."""
    dt, v, o, c, h, w = image.shape
    assert o == 1, "view(dt*V, C, H, W) implies o == 1"
    x = image.reshape(dt * v, c, h, w)
    x_nhwc = jnp.transpose(x, (0, 2, 3, 1))                   # NCHW -> NHWC
    feats = image_tower_forward(prepped["tower"], x_nhwc)     # (dt*V, F) bf16
    z_t, kl_loss, mu = dual_gaussian_lstm_forward(prepped["lstm"], feats,
                                                  dt, v, key)
    return z_t, kl_loss, mu


# ----------------------------------------------------------------------------
if __name__ == "__main__":
    key = jax.random.PRNGKey(0)
    dt, V, o, C, H, W = 4, 2, 1, 3, 16, 16
    FEAT_DIM, OUT_DIM = 32, 32

    k_img, k_param, k_fwd = jax.random.split(key, 3)
    image = jax.random.normal(k_img, (dt, V, o, C, H, W), jnp.float32)
    params = init_params(k_param, C, FEAT_DIM, OUT_DIM)
    prepped = prepare_params(params, image.shape)    # one-time prep, off hot path

    z_t, kl_loss, mu = image_learned_prior_forward(prepped, image, k_fwd)
    jax.block_until_ready((z_t, kl_loss, mu))

    assert z_t.shape == (dt, V, OUT_DIM)
    assert mu.shape == (dt - 1, V, OUT_DIM)
    assert kl_loss.shape == ()
    assert bool(jnp.isfinite(kl_loss))
    print("KERNEL_OK")
</pallas_src>

<mosaic_0001>
module attributes {stable_mosaic.version = 11 : i64} {
  func.func @_tower_kernel(%arg0: i32, %arg1: memref<3x1x16x54xbf16, #tpu.memory_space<vmem>>, %arg2: memref<3x54x512xbf16, #tpu.memory_space<vmem>>, %arg3: memref<1x512xf32, #tpu.memory_space<vmem>>, %arg4: memref<512x32xbf16, #tpu.memory_space<vmem>>, %arg5: memref<1x1x32xbf16, #tpu.memory_space<vmem>>) attributes {dimension_semantics = [#tpu.dimension_semantics<parallel>], iteration_bounds = array<i64: 8>, scalar_prefetch = 0 : i64, scratch_operands = 0 : i64, tpu.core_type = #tpu.core_type<tc>, window_params = [{transform_indices = @transform_0, window_bounds = array<i64: 3, 1, 16, 54>}, {pipeline_mode = #tpu.pipeline_mode<synchronous>, transform_indices = @transform_1, window_bounds = array<i64: 3, 54, 512>}, {pipeline_mode = #tpu.pipeline_mode<synchronous>, transform_indices = @transform_2, window_bounds = array<i64: 1, 512>}, {pipeline_mode = #tpu.pipeline_mode<synchronous>, transform_indices = @transform_3, window_bounds = array<i64: 512, 32>}, {transform_indices = @transform_4, window_bounds = array<i64: 1, 1, 32>}]} {
    %c0 = arith.constant 0 : index
    %c0_0 = arith.constant 0 : index
    %c0_1 = arith.constant 0 : index
    %c0_2 = arith.constant 0 : index
    %0 = vector.load %arg1[%c0, %c0_0, %c0_1, %c0_2] : memref<3x1x16x54xbf16, #tpu.memory_space<vmem>>, vector<1x1x16x54xbf16>
    %1 = vector.shape_cast %0 : vector<1x1x16x54xbf16> to vector<16x54xbf16>
    %c0_3 = arith.constant 0 : index
    %c0_4 = arith.constant 0 : index
    %c0_5 = arith.constant 0 : index
    %2 = vector.load %arg2[%c0_3, %c0_4, %c0_5] : memref<3x54x512xbf16, #tpu.memory_space<vmem>>, vector<1x54x512xbf16>
    %3 = vector.shape_cast %2 : vector<1x54x512xbf16> to vector<54x512xbf16>
    %cst = arith.constant dense<0.000000e+00> : vector<16x512xf32>
    %4 = tpu.matmul %1, %3, %cst {dimension_numbers = #tpu.dot_dimension_numbers<[1], [0], [0], [1], [0, 0, 1, 1], [], []>} : vector<16x54xbf16>, vector<54x512xbf16>, vector<16x512xf32> -> vector<16x512xf32>
    %c1 = arith.constant 1 : index
    %c0_6 = arith.constant 0 : index
    %c0_7 = arith.constant 0 : index
    %c0_8 = arith.constant 0 : index
    %5 = vector.load %arg1[%c1, %c0_6, %c0_7, %c0_8] : memref<3x1x16x54xbf16, #tpu.memory_space<vmem>>, vector<1x1x16x54xbf16>
    %6 = vector.shape_cast %5 : vector<1x1x16x54xbf16> to vector<16x54xbf16>
    %c1_9 = arith.constant 1 : index
    %c0_10 = arith.constant 0 : index
    %c0_11 = arith.constant 0 : index
    %7 = vector.load %arg2[%c1_9, %c0_10, %c0_11] : memref<3x54x512xbf16, #tpu.memory_space<vmem>>, vector<1x54x512xbf16>
    %8 = vector.shape_cast %7 : vector<1x54x512xbf16> to vector<54x512xbf16>
    %cst_12 = arith.constant dense<0.000000e+00> : vector<16x512xf32>
    %9 = tpu.matmul %6, %8, %cst_12 {dimension_numbers = #tpu.dot_dimension_numbers<[1], [0], [0], [1], [0, 0, 1, 1], [], []>} : vector<16x54xbf16>, vector<54x512xbf16>, vector<16x512xf32> -> vector<16x512xf32>
    %10 = arith.addf %4, %9 : vector<16x512xf32>
    %c2 = arith.constant 2 : index
    %c0_13 = arith.constant 0 : index
    %c0_14 = arith.constant 0 : index
    %c0_15 = arith.constant 0 : index
    %11 = vector.load %arg1[%c2, %c0_13, %c0_14, %c0_15] : memref<3x1x16x54xbf16, #tpu.memory_space<vmem>>, vector<1x1x16x54xbf16>
    %12 = vector.shape_cast %11 : vector<1x1x16x54xbf16> to vector<16x54xbf16>
    %c2_16 = arith.constant 2 : index
    %c0_17 = arith.constant 0 : index
    %c0_18 = arith.constant 0 : index
    %13 = vector.load %arg2[%c2_16, %c0_17, %c0_18] : memref<3x54x512xbf16, #tpu.memory_space<vmem>>, vector<1x54x512xbf16>
    %14 = vector.shape_cast %13 : vector<1x54x512xbf16> to vector<54x512xbf16>
    %cst_19 = arith.constant dense<0.000000e+00> : vector<16x512xf32>
    %15 = tpu.matmul %12, %14, %cst_19 {dimension_numbers = #tpu.dot_dimension_numbers<[1], [0], [0], [1], [0, 0, 1, 1], [], []>} : vector<16x54xbf16>, vector<54x512xbf16>, vector<16x512xf32> -> vector<16x512xf32>
    %16 = arith.addf %10, %15 : vector<16x512xf32>
    %c0_20 = arith.constant 0 : index
    %c0_21 = arith.constant 0 : index
    %17 = vector.load %arg3[%c0_20, %c0_21] : memref<1x512xf32, #tpu.memory_space<vmem>>, vector<1x512xf32>
    %18 = vector.broadcast %17 : vector<1x512xf32> to vector<16x512xf32>
    %19 = arith.addf %16, %18 : vector<16x512xf32>
    %cst_22 = arith.constant 0.000000e+00 : f32
    %20 = vector.broadcast %cst_22 : f32 to vector<16x512xf32>
    %21 = arith.maximumf %19, %20 : vector<16x512xf32>
    %cst_23 = arith.constant dense<0.000000e+00> : vector<512xf32>
    %22 = vector.multi_reduction <add>, %21, %cst_23 [0] : vector<16x512xf32> to vector<512xf32>
    %23 = vector.shape_cast %22 : vector<512xf32> to vector<1x512xf32>
    %24 = arith.truncf %23 : vector<1x512xf32> to vector<1x512xbf16>
    %c0_24 = arith.constant 0 : index
    %c0_25 = arith.constant 0 : index
    %25 = vector.load %arg4[%c0_24, %c0_25] : memref<512x32xbf16, #tpu.memory_space<vmem>>, vector<512x32xbf16>
    %cst_26 = arith.constant dense<0.000000e+00> : vector<1x32xf32>
    %26 = tpu.matmul %24, %25, %cst_26 {dimension_numbers = #tpu.dot_dimension_numbers<[1], [0], [0], [1], [0, 0, 1, 1], [], []>} : vector<1x512xbf16>, vector<512x32xbf16>, vector<1x32xf32> -> vector<1x32xf32>
    %27 = arith.truncf %26 : vector<1x32xf32> to vector<1x32xbf16>
    %c0_27 = arith.constant 0 : index
    %c0_28 = arith.constant 0 : index
    %c0_29 = arith.constant 0 : index
    %28 = vector.load %arg5[%c0_27, %c0_28, %c0_29] : memref<1x1x32xbf16, #tpu.memory_space<vmem>>, vector<1x1x32xbf16>
    %29 = vector.shape_cast %28 : vector<1x1x32xbf16> to vector<1x32xbf16>
    %30 = vector.shape_cast %27 : vector<1x32xbf16> to vector<1x1x32xbf16>
    tpu.vector_store %arg5[%c0_27, %c0_28, %c0_29], %30 {strides = array<i32>} : memref<1x1x32xbf16, #tpu.memory_space<vmem>>, vector<1x1x32xbf16>,
    return
  }
  func.func @transform_0(%arg0: i32) -> (i32, i32, i32, i32) {
    %c0_i32 = arith.constant 0 : i32
    %c0_i32_0 = arith.constant 0 : i32
    %c0_i32_1 = arith.constant 0 : i32
    %c0_i32_2 = arith.constant 0 : i32
    return %c0_i32, %arg0, %c0_i32_0, %c0_i32_1 : i32, i32, i32, i32
  }
  func.func @transform_1(%arg0: i32) -> (i32, i32, i32) {
    %c0_i32 = arith.constant 0 : i32
    %c0_i32_0 = arith.constant 0 : i32
    %c0_i32_1 = arith.constant 0 : i32
    %c0_i32_2 = arith.constant 0 : i32
    return %c0_i32, %c0_i32_0, %c0_i32_1 : i32, i32, i32
  }
  func.func @transform_2(%arg0: i32) -> (i32, i32) {
    %c0_i32 = arith.constant 0 : i32
    %c0_i32_0 = arith.constant 0 : i32
    %c0_i32_1 = arith.constant 0 : i32
    return %c0_i32, %c0_i32_0 : i32, i32
  }
  func.func @transform_3(%arg0: i32) -> (i32, i32) {
    %c0_i32 = arith.constant 0 : i32
    %c0_i32_0 = arith.constant 0 : i32
    %c0_i32_1 = arith.constant 0 : i32
    return %c0_i32, %c0_i32_0 : i32, i32
  }
  func.func @transform_4(%arg0: i32) -> (i32, i32, i32) {
    %c0_i32 = arith.constant 0 : i32
    %c0_i32_0 = arith.constant 0 : i32
    %c0_i32_1 = arith.constant 0 : i32
    return %arg0, %c0_i32, %c0_i32_0 : i32, i32, i32
  }
}

module attributes {stable_mosaic.version = 11 : i64} {
  func.func @kernel(%arg0: i32, %arg1: memref<8x32xbf16, #tpu.memory_space<vmem>>, %arg2: memref<1x32x32xbf16, #tpu.memory_space<vmem>>, %arg3: memref<1x1x32xf32, #tpu.memory_space<vmem>>, %arg4: memref<1x32x128xbf16, #tpu.memory_space<vmem>>, %arg5: memref<1x1x128xf32, #tpu.memory_space<vmem>>, %arg6: memref<1x32x128xbf16, #tpu.memory_space<vmem>>, %arg7: memref<1x32x64xbf16, #tpu.memory_space<vmem>>, %arg8: memref<1x1x64xf32, #tpu.memory_space<vmem>>, %arg9: memref<1x8x64xf32, #tpu.memory_space<vmem>>, %arg10: memref<8x128xf32, #tpu.memory_space<vmem>>, %arg11: memref<8x32xf32, #tpu.memory_space<vmem>>) attributes {dimension_semantics = [#tpu.dimension_semantics<parallel>], iteration_bounds = array<i64: 2>, scalar_prefetch = 0 : i64, scratch_operands = 2 : i64, tpu.core_type = #tpu.core_type<tc>, window_params = [{pipeline_mode = #tpu.pipeline_mode<synchronous>, transform_indices = @transform_0, window_bounds = array<i64: 8, 32>}, {transform_indices = @transform_1, window_bounds = array<i64: 1, 32, 32>}, {transform_indices = @transform_2, window_bounds = array<i64: 1, 1, 32>}, {transform_indices = @transform_3, window_bounds = array<i64: 1, 32, 128>}, {transform_indices = @transform_4, window_bounds = array<i64: 1, 1, 128>}, {transform_indices = @transform_5, window_bounds = array<i64: 1, 32, 128>}, {transform_indices = @transform_6, window_bounds = array<i64: 1, 32, 64>}, {transform_indices = @transform_7, window_bounds = array<i64: 1, 1, 64>}, {transform_indices = @transform_8, window_bounds = array<i64: 1, 8, 64>}]} {
    %c0 = arith.constant 0 : index
    %c0_0 = arith.constant 0 : index
    %0 = vector.load %arg1[%c0, %c0_0] : memref<8x32xbf16, #tpu.memory_space<vmem>>, vector<8x32xbf16>
    %c0_1 = arith.constant 0 : index
    %c0_2 = arith.constant 0 : index
    %c0_3 = arith.constant 0 : index
    %1 = vector.load %arg2[%c0_1, %c0_2, %c0_3] : memref<1x32x32xbf16, #tpu.memory_space<vmem>>, vector<1x32x32xbf16>
    %2 = vector.shape_cast %1 : vector<1x32x32xbf16> to vector<32x32xbf16>
    %cst = arith.constant dense<0.000000e+00> : vector<8x32xf32>
    %3 = tpu.matmul %0, %2, %cst {dimension_numbers = #tpu.dot_dimension_numbers<[1], [0], [0], [1], [0, 0, 1, 1], [], []>} : vector<8x32xbf16>, vector<32x32xbf16>, vector<8x32xf32> -> vector<8x32xf32>
    %c0_4 = arith.constant 0 : index
    %c0_5 = arith.constant 0 : index
    %c0_6 = arith.constant 0 : index
    %4 = vector.load %arg3[%c0_4, %c0_5, %c0_6] : memref<1x1x32xf32, #tpu.memory_space<vmem>>, vector<1x1x32xf32>
    %5 = vector.shape_cast %4 : vector<1x1x32xf32> to vector<1x32xf32>
    %6 = vector.broadcast %5 : vector<1x32xf32> to vector<8x32xf32>
    %7 = arith.addf %3, %6 : vector<8x32xf32>
    %8 = arith.truncf %7 : vector<8x32xf32> to vector<8x32xbf16>
    %c0_7 = arith.constant 0 : index
    %c0_8 = arith.constant 0 : index
    %c0_9 = arith.constant 0 : index
    %9 = vector.load %arg4[%c0_7, %c0_8, %c0_9] : memref<1x32x128xbf16, #tpu.memory_space<vmem>>, vector<1x32x128xbf16>
    %10 = vector.shape_cast %9 : vector<1x32x128xbf16> to vector<32x128xbf16>
    %cst_10 = arith.constant dense<0.000000e+00> : vector<8x128xf32>
    %11 = tpu.matmul %8, %10, %cst_10 {dimension_numbers = #tpu.dot_dimension_numbers<[1], [0], [0], [1], [0, 0, 1, 1], [], []>} : vector<8x32xbf16>, vector<32x128xbf16>, vector<8x128xf32> -> vector<8x128xf32>
    %c0_11 = arith.constant 0 : index
    %c0_12 = arith.constant 0 : index
    %c0_13 = arith.constant 0 : index
    %12 = vector.load %arg5[%c0_11, %c0_12, %c0_13] : memref<1x1x128xf32, #tpu.memory_space<vmem>>, vector<1x1x128xf32>
    %13 = vector.shape_cast %12 : vector<1x1x128xf32> to vector<1x128xf32>
    %14 = vector.broadcast %13 : vector<1x128xf32> to vector<8x128xf32>
    %15 = arith.addf %11, %14 : vector<8x128xf32>
    %c0_14 = arith.constant 0 : index
    %c0_15 = arith.constant 0 : index
    %16 = vector.load %arg10[%c0_14, %c0_15] : memref<8x128xf32, #tpu.memory_space<vmem>>, vector<8x128xf32>
    tpu.vector_store %arg10[%c0_14, %c0_15], %15 {strides = array<i32>} : memref<8x128xf32, #tpu.memory_space<vmem>>, vector<8x128xf32>,
    %c0_16 = arith.constant 0 : index
    %c0_17 = arith.constant 0 : index
    %c0_18 = arith.constant 0 : index
    %17 = vector.load %arg6[%c0_16, %c0_17, %c0_18] : memref<1x32x128xbf16, #tpu.memory_space<vmem>>, vector<1x32x128xbf16>
    %18 = vector.shape_cast %17 : vector<1x32x128xbf16> to vector<32x128xbf16>
    %cst_19 = arith.constant 0.000000e+00 : f32
    %19 = vector.broadcast %cst_19 : f32 to vector<2x32xf32>
    %c0_i32 = arith.constant 0 : i32
    %c2_i32 = arith.constant 2 : i32
    %20 = arith.muli %c0_i32, %c2_i32 : i32
    %21 = arith.index_cast %20 : i32 to index
    %c0_20 = arith.constant 0 : index
    %22 = vector.load %arg10[%21, %c0_20] : memref<8x128xf32, #tpu.memory_space<vmem>>, vector<2x128xf32>
    %23 = arith.truncf %19 : vector<2x32xf32> to vector<2x32xbf16>
    %cst_21 = arith.constant dense<0.000000e+00> : vector<2x128xf32>
    %24 = tpu.matmul %23, %18, %cst_21 {dimension_numbers = #tpu.dot_dimension_numbers<[1], [0], [0], [1], [0, 0, 1, 1], [], []>} : vector<2x32xbf16>, vector<32x128xbf16>, vector<2x128xf32> -> vector<2x128xf32>
    %25 = arith.addf %22, %24 : vector<2x128xf32>
    %26 = tpu.iota {dimensions = array<i32: 1>} : vector<2x128xi32>
    %c64_i32 = arith.constant 64 : i32
    %27 = vector.broadcast %c64_i32 : i32 to vector<2x128xi32>
    %28 = arith.cmpi sge, %26, %27 : vector<2x128xi32>
    %c96_i32 = arith.constant 96 : i32
    %29 = vector.broadcast %c96_i32 : i32 to vector<2x128xi32>
    %30 = arith.cmpi slt, %26, %29 : vector<2x128xi32>
    %31 = arith.andi %28, %30 : vector<2x128xi1>
    %32 = math.tanh %25 : vector<2x128xf32>
    %33 = arith.negf %25 : vector<2x128xf32>
    %34 = math.exp %33 : vector<2x128xf32>
    %cst_22 = arith.constant 1.000000e+00 : f32
    %35 = vector.broadcast %cst_22 : f32 to vector<2x128xf32>
    %36 = arith.addf %35, %34 : vector<2x128xf32>
    %37 = arith.divf %35, %36 : vector<2x128xf32>
    %38 = arith.select %31, %32, %37 : vector<2x128xi1>, vector<2x128xf32>
    %39 = vector.extract_strided_slice %38 {offsets = [0, 0], sizes = [2, 32], strides = [1, 1]} : vector<2x128xf32> to vector<2x32xf32>
    %40 = vector.extract_strided_slice %38 {offsets = [0, 32], sizes = [2, 32], strides = [1, 1]} : vector<2x128xf32> to vector<2x32xf32>
    %41 = vector.extract_strided_slice %38 {offsets = [0, 64], sizes = [2, 32], strides = [1, 1]} : vector<2x128xf32> to vector<2x32xf32>
    %42 = vector.extract_strided_slice %38 {offsets = [0, 96], sizes = [2, 32], strides = [1, 1]} : vector<2x128xf32> to vector<2x32xf32>
    %43 = arith.mulf %40, %19 : vector<2x32xf32>
    %44 = arith.mulf %39, %41 : vector<2x32xf32>
    %45 = arith.addf %43, %44 : vector<2x32xf32>
    %46 = math.tanh %45 : vector<2x32xf32>
    %47 = arith.mulf %42, %46 : vector<2x32xf32>
    %c2_i32_23 = arith.constant 2 : i32
    %48 = arith.muli %c0_i32, %c2_i32_23 : i32
    %49 = arith.index_cast %48 : i32 to index
    %c0_24 = arith.constant 0 : index
    %50 = vector.load %arg11[%49, %c0_24] : memref<8x32xf32, #tpu.memory_space<vmem>>, vector<2x32xf32>
    tpu.vector_store %arg11[%49, %c0_24], %47 {strides = array<i32>} : memref<8x32xf32, #tpu.memory_space<vmem>>, vector<2x32xf32>,
    %c1_i32 = arith.constant 1 : i32
    %c2_i32_25 = arith.constant 2 : i32
    %51 = arith.muli %c1_i32, %c2_i32_25 : i32
    %52 = arith.index_cast %51 : i32 to index
    %c0_26 = arith.constant 0 : index
    %53 = vector.load %arg10[%52, %c0_26] : memref<8x128xf32, #tpu.memory_space<vmem>>, vector<2x128xf32>
    %54 = arith.truncf %47 : vector<2x32xf32> to vector<2x32xbf16>
    %cst_27 = arith.constant dense<0.000000e+00> : vector<2x128xf32>
    %55 = tpu.matmul %54, %18, %cst_27 {dimension_numbers = #tpu.dot_dimension_numbers<[1], [0], [0], [1], [0, 0, 1, 1], [], []>} : vector<2x32xbf16>, vector<32x128xbf16>, vector<2x128xf32> -> vector<2x128xf32>
    %56 = arith.addf %53, %55 : vector<2x128xf32>
    %57 = tpu.iota {dimensions = array<i32: 1>} : vector<2x128xi32>
    %c64_i32_28 = arith.constant 64 : i32
    %58 = vector.broadcast %c64_i32_28 : i32 to vector<2x128xi32>
    %59 = arith.cmpi sge, %57, %58 : vector<2x128xi32>
    %c96_i32_29 = arith.constant 96 : i32
    %60 = vector.broadcast %c96_i32_29 : i32 to vector<2x128xi32>
    %61 = arith.cmpi slt, %57, %60 : vector<2x128xi32>
    %62 = arith.andi %59, %61 : vector<2x128xi1>
    %63 = math.tanh %56 : vector<2x128xf32>
    %64 = arith.negf %56 : vector<2x128xf32>
    %65 = math.exp %64 : vector<2x128xf32>
    %cst_30 = arith.constant 1.000000e+00 : f32
    %66 = vector.broadcast %cst_30 : f32 to vector<2x128xf32>
    %67 = arith.addf %66, %65 : vector<2x128xf32>
    %68 = arith.divf %66, %67 : vector<2x128xf32>
    %69 = arith.select %62, %63, %68 : vector<2x128xi1>, vector<2x128xf32>
    %70 = vector.extract_strided_slice %69 {offsets = [0, 0], sizes = [2, 32], strides = [1, 1]} : vector<2x128xf32> to vector<2x32xf32>
    %71 = vector.extract_strided_slice %69 {offsets = [0, 32], sizes = [2, 32], strides = [1, 1]} : vector<2x128xf32> to vector<2x32xf32>
    %72 = vector.extract_strided_slice %69 {offsets = [0, 64], sizes = [2, 32], strides = [1, 1]} : vector<2x128xf32> to vector<2x32xf32>
    %73 = vector.extract_strided_slice %69 {offsets = [0, 96], sizes = [2, 32], strides = [1, 1]} : vector<2x128xf32> to vector<2x32xf32>
    %74 = arith.mulf %71, %45 : vector<2x32xf32>
    %75 = arith.mulf %70, %72 : vector<2x32xf32>
    %76 = arith.addf %74, %75 : vector<2x32xf32>
    %77 = math.tanh %76 : vector<2x32xf32>
    %78 = arith.mulf %73, %77 : vector<2x32xf32>
    %c2_i32_31 = arith.constant 2 : i32
    %79 = arith.muli %c1_i32, %c2_i32_31 : i32
    %80 = arith.index_cast %79 : i32 to index
    %c0_32 = arith.constant 0 : index
    %81 = vector.load %arg11[%80, %c0_32] : memref<8x32xf32, #tpu.memory_space<vmem>>, vector<2x32xf32>
    tpu.vector_store %arg11[%80, %c0_32], %78 {strides = array<i32>} : memref<8x32xf32, #tpu.memory_space<vmem>>, vector<2x32xf32>,
    %c2_i32_33 = arith.constant 2 : i32
    %c2_i32_34 = arith.constant 2 : i32
    %82 = arith.muli %c2_i32_33, %c2_i32_34 : i32
    %83 = arith.index_cast %82 : i32 to index
    %c0_35 = arith.constant 0 : index
    %84 = vector.load %arg10[%83, %c0_35] : memref<8x128xf32, #tpu.memory_space<vmem>>, vector<2x128xf32>
    %85 = arith.truncf %78 : vector<2x32xf32> to vector<2x32xbf16>
    %cst_36 = arith.constant dense<0.000000e+00> : vector<2x128xf32>
    %86 = tpu.matmul %85, %18, %cst_36 {dimension_numbers = #tpu.dot_dimension_numbers<[1], [0], [0], [1], [0, 0, 1, 1], [], []>} : vector<2x32xbf16>, vector<32x128xbf16>, vector<2x128xf32> -> vector<2x128xf32>
    %87 = arith.addf %84, %86 : vector<2x128xf32>
    %88 = tpu.iota {dimensions = array<i32: 1>} : vector<2x128xi32>
    %c64_i32_37 = arith.constant 64 : i32
    %89 = vector.broadcast %c64_i32_37 : i32 to vector<2x128xi32>
    %90 = arith.cmpi sge, %88, %89 : vector<2x128xi32>
    %c96_i32_38 = arith.constant 96 : i32
    %91 = vector.broadcast %c96_i32_38 : i32 to vector<2x128xi32>
    %92 = arith.cmpi slt, %88, %91 : vector<2x128xi32>
    %93 = arith.andi %90, %92 : vector<2x128xi1>
    %94 = math.tanh %87 : vector<2x128xf32>
    %95 = arith.negf %87 : vector<2x128xf32>
    %96 = math.exp %95 : vector<2x128xf32>
    %cst_39 = arith.constant 1.000000e+00 : f32
    %97 = vector.broadcast %cst_39 : f32 to vector<2x128xf32>
    %98 = arith.addf %97, %96 : vector<2x128xf32>
    %99 = arith.divf %97, %98 : vector<2x128xf32>
    %100 = arith.select %93, %94, %99 : vector<2x128xi1>, vector<2x128xf32>
    %101 = vector.extract_strided_slice %100 {offsets = [0, 0], sizes = [2, 32], strides = [1, 1]} : vector<2x128xf32> to vector<2x32xf32>
    %102 = vector.extract_strided_slice %100 {offsets = [0, 32], sizes = [2, 32], strides = [1, 1]} : vector<2x128xf32> to vector<2x32xf32>
    %103 = vector.extract_strided_slice %100 {offsets = [0, 64], sizes = [2, 32], strides = [1, 1]} : vector<2x128xf32> to vector<2x32xf32>
    %104 = vector.extract_strided_slice %100 {offsets = [0, 96], sizes = [2, 32], strides = [1, 1]} : vector<2x128xf32> to vector<2x32xf32>
    %105 = arith.mulf %102, %76 : vector<2x32xf32>
    %106 = arith.mulf %101, %103 : vector<2x32xf32>
    %107 = arith.addf %105, %106 : vector<2x32xf32>
    %108 = math.tanh %107 : vector<2x32xf32>
    %109 = arith.mulf %104, %108 : vector<2x32xf32>
    %c2_i32_40 = arith.constant 2 : i32
    %110 = arith.muli %c2_i32_33, %c2_i32_40 : i32
    %111 = arith.index_cast %110 : i32 to index
    %c0_41 = arith.constant 0 : index
    %112 = vector.load %arg11[%111, %c0_41] : memref<8x32xf32, #tpu.memory_space<vmem>>, vector<2x32xf32>
    tpu.vector_store %arg11[%111, %c0_41], %109 {strides = array<i32>} : memref<8x32xf32, #tpu.memory_space<vmem>>, vector<2x32xf32>,
    %c3_i32 = arith.constant 3 : i32
    %c2_i32_42 = arith.constant 2 : i32
    %113 = arith.muli %c3_i32, %c2_i32_42 : i32
    %114 = arith.index_cast %113 : i32 to index
    %c0_43 = arith.constant 0 : index
    %115 = vector.load %arg10[%114, %c0_43] : memref<8x128xf32, #tpu.memory_space<vmem>>, vector<2x128xf32>
    %116 = arith.truncf %109 : vector<2x32xf32> to vector<2x32xbf16>
    %cst_44 = arith.constant dense<0.000000e+00> : vector<2x128xf32>
    %117 = tpu.matmul %116, %18, %cst_44 {dimension_numbers = #tpu.dot_dimension_numbers<[1], [0], [0], [1], [0, 0, 1, 1], [], []>} : vector<2x32xbf16>, vector<32x128xbf16>, vector<2x128xf32> -> vector<2x128xf32>
    %118 = arith.addf %115, %117 : vector<2x128xf32>
    %119 = tpu.iota {dimensions = array<i32: 1>} : vector<2x128xi32>
    %c64_i32_45 = arith.constant 64 : i32
    %120 = vector.broadcast %c64_i32_45 : i32 to vector<2x128xi32>
    %121 = arith.cmpi sge, %119, %120 : vector<2x128xi32>
    %c96_i32_46 = arith.constant 96 : i32
    %122 = vector.broadcast %c96_i32_46 : i32 to vector<2x128xi32>
    %123 = arith.cmpi slt, %119, %122 : vector<2x128xi32>
    %124 = arith.andi %121, %123 : vector<2x128xi1>
    %125 = math.tanh %118 : vector<2x128xf32>
    %126 = arith.negf %118 : vector<2x128xf32>
    %127 = math.exp %126 : vector<2x128xf32>
    %cst_47 = arith.constant 1.000000e+00 : f32
    %128 = vector.broadcast %cst_47 : f32 to vector<2x128xf32>
    %129 = arith.addf %128, %127 : vector<2x128xf32>
    %130 = arith.divf %128, %129 : vector<2x128xf32>
    %131 = arith.select %124, %125, %130 : vector<2x128xi1>, vector<2x128xf32>
    %132 = vector.extract_strided_slice %131 {offsets = [0, 0], sizes = [2, 32], strides = [1, 1]} : vector<2x128xf32> to vector<2x32xf32>
    %133 = vector.extract_strided_slice %131 {offsets = [0, 32], sizes = [2, 32], strides = [1, 1]} : vector<2x128xf32> to vector<2x32xf32>
    %134 = vector.extract_strided_slice %131 {offsets = [0, 64], sizes = [2, 32], strides = [1, 1]} : vector<2x128xf32> to vector<2x32xf32>
    %135 = vector.extract_strided_slice %131 {offsets = [0, 96], sizes = [2, 32], strides = [1, 1]} : vector<2x128xf32> to vector<2x32xf32>
    %136 = arith.mulf %133, %107 : vector<2x32xf32>
    %137 = arith.mulf %132, %134 : vector<2x32xf32>
    %138 = arith.addf %136, %137 : vector<2x32xf32>
    %139 = math.tanh %138 : vector<2x32xf32>
    %140 = arith.mulf %135, %139 : vector<2x32xf32>
    %c2_i32_48 = arith.constant 2 : i32
    %141 = arith.muli %c3_i32, %c2_i32_48 : i32
    %142 = arith.index_cast %141 : i32 to index
    %c0_49 = arith.constant 0 : index
    %143 = vector.load %arg11[%142, %c0_49] : memref<8x32xf32, #tpu.memory_space<vmem>>, vector<2x32xf32>
    tpu.vector_store %arg11[%142, %c0_49], %140 {strides = array<i32>} : memref<8x32xf32, #tpu.memory_space<vmem>>, vector<2x32xf32>,
    %c4_i32 = arith.constant 4 : i32
    %c0_50 = arith.constant 0 : index
    %c0_51 = arith.constant 0 : index
    %144 = vector.load %arg11[%c0_50, %c0_51] : memref<8x32xf32, #tpu.memory_space<vmem>>, vector<8x32xf32>
    %145 = arith.truncf %144 : vector<8x32xf32> to vector<8x32xbf16>
    %c0_52 = arith.constant 0 : index
    %c0_53 = arith.constant 0 : index
    %c0_54 = arith.constant 0 : index
    %146 = vector.load %arg7[%c0_52, %c0_53, %c0_54] : memref<1x32x64xbf16, #tpu.memory_space<vmem>>, vector<1x32x64xbf16>
    %147 = vector.shape_cast %146 : vector<1x32x64xbf16> to vector<32x64xbf16>
    %cst_55 = arith.constant dense<0.000000e+00> : vector<8x64xf32>
    %148 = tpu.matmul %145, %147, %cst_55 {dimension_numbers = #tpu.dot_dimension_numbers<[1], [0], [0], [1], [0, 0, 1, 1], [], []>} : vector<8x32xbf16>, vector<32x64xbf16>, vector<8x64xf32> -> vector<8x64xf32>
    %c0_56 = arith.constant 0 : index
    %c0_57 = arith.constant 0 : index
    %c0_58 = arith.constant 0 : index
    %149 = vector.load %arg8[%c0_56, %c0_57, %c0_58] : memref<1x1x64xf32, #tpu.memory_space<vmem>>, vector<1x1x64xf32>
    %150 = vector.shape_cast %149 : vector<1x1x64xf32> to vector<1x64xf32>
    %151 = vector.broadcast %150 : vector<1x64xf32> to vector<8x64xf32>
    %152 = arith.addf %148, %151 : vector<8x64xf32>
    %c0_59 = arith.constant 0 : index
    %c0_60 = arith.constant 0 : index
    %c0_61 = arith.constant 0 : index
    %153 = vector.load %arg9[%c0_59, %c0_60, %c0_61] : memref<1x8x64xf32, #tpu.memory_space<vmem>>, vector<1x8x64xf32>
    %154 = vector.shape_cast %153 : vector<1x8x64xf32> to vector<8x64xf32>
    %155 = vector.shape_cast %152 : vector<8x64xf32> to vector<1x8x64xf32>
    tpu.vector_store %arg9[%c0_59, %c0_60, %c0_61], %155 {strides = array<i32>} : memref<1x8x64xf32, #tpu.memory_space<vmem>>, vector<1x8x64xf32>,
    return
  }
  func.func @transform_0(%arg0: i32) -> (i32, i32) {
    %c0_i32 = arith.constant 0 : i32
    %c0_i32_0 = arith.constant 0 : i32
    %c0_i32_1 = arith.constant 0 : i32
    return %c0_i32, %c0_i32_0 : i32, i32
  }
  func.func @transform_1(%arg0: i32) -> (i32, i32, i32) {
    %c0_i32 = arith.constant 0 : i32
    %c0_i32_0 = arith.constant 0 : i32
    %c0_i32_1 = arith.constant 0 : i32
    return %arg0, %c0_i32, %c0_i32_0 : i32, i32, i32
  }
  func.func @transform_2(%arg0: i32) -> (i32, i32, i32) {
    %c0_i32 = arith.constant 0 : i32
    %c0_i32_0 = arith.constant 0 : i32
    %c0_i32_1 = arith.constant 0 : i32
    return %arg0, %c0_i32, %c0_i32_0 : i32, i32, i32
  }
  func.func @transform_3(%arg0: i32) -> (i32, i32, i32) {
    %c0_i32 = arith.constant 0 : i32
    %c0_i32_0 = arith.constant 0 : i32
    %c0_i32_1 = arith.constant 0 : i32
    return %arg0, %c0_i32, %c0_i32_0 : i32, i32, i32
  }
  func.func @transform_4(%arg0: i32) -> (i32, i32, i32) {
    %c0_i32 = arith.constant 0 : i32
    %c0_i32_0 = arith.constant 0 : i32
    %c0_i32_1 = arith.constant 0 : i32
    return %arg0, %c0_i32, %c0_i32_0 : i32, i32, i32
  }
  func.func @transform_5(%arg0: i32) -> (i32, i32, i32) {
    %c0_i32 = arith.constant 0 : i32
    %c0_i32_0 = arith.constant 0 : i32
    %c0_i32_1 = arith.constant 0 : i32
    return %arg0, %c0_i32, %c0_i32_0 : i32, i32, i32
  }
  func.func @transform_6(%arg0: i32) -> (i32, i32, i32) {
    %c0_i32 = arith.constant 0 : i32
    %c0_i32_0 = arith.constant 0 : i32
    %c0_i32_1 = arith.constant 0 : i32
    return %arg0, %c0_i32, %c0_i32_0 : i32, i32, i32
  }
  func.func @transform_7(%arg0: i32) -> (i32, i32, i32) {
    %c0_i32 = arith.constant 0 : i32
    %c0_i32_0 = arith.constant 0 : i32
    %c0_i32_1 = arith.constant 0 : i32
    return %arg0, %c0_i32, %c0_i32_0 : i32, i32, i32
  }
  func.func @transform_8(%arg0: i32) -> (i32, i32, i32) {
    %c0_i32 = arith.constant 0 : i32
    %c0_i32_0 = arith.constant 0 : i32
    %c0_i32_1 = arith.constant 0 : i32
    return %arg0, %c0_i32, %c0_i32_0 : i32, i32, i32
  }
}

module attributes {stable_mosaic.version = 11 : i64} {
  func.func @_reparam_kl_kernel(%arg0: i32, %arg1: memref<6x64xf32, #tpu.memory_space<vmem>>, %arg2: memref<6x64xf32, #tpu.memory_space<vmem>>, %arg3: memref<6x32xf32, #tpu.memory_space<vmem>>, %arg4: memref<6x32xf32, #tpu.memory_space<vmem>>, %arg5: memref<1xf32, #tpu.memory_space<smem>>) attributes {dimension_semantics = [#tpu.dimension_semantics<arbitrary>], iteration_bounds = array<i64: 1>, scalar_prefetch = 0 : i64, scratch_operands = 0 : i64, tpu.core_type = #tpu.core_type<tc>, window_params = [{pipeline_mode = #tpu.pipeline_mode<synchronous>, transform_indices = @transform_0, window_bounds = array<i64: 6, 64>}, {pipeline_mode = #tpu.pipeline_mode<synchronous>, transform_indices = @transform_1, window_bounds = array<i64: 6, 64>}, {pipeline_mode = #tpu.pipeline_mode<synchronous>, transform_indices = @transform_2, window_bounds = array<i64: 6, 32>}, {pipeline_mode = #tpu.pipeline_mode<synchronous>, transform_indices = @transform_3, window_bounds = array<i64: 6, 32>}, {transform_indices = @transform_4, window_bounds = array<i64: 1>}]} {
    %c0 = arith.constant 0 : index
    %c0_0 = arith.constant 0 : index
    %0 = vector.load %arg1[%c0, %c0_0] : memref<6x64xf32, #tpu.memory_space<vmem>>, vector<6x64xf32>
    %c0_1 = arith.constant 0 : index
    %c0_2 = arith.constant 0 : index
    %1 = vector.load %arg2[%c0_1, %c0_2] : memref<6x64xf32, #tpu.memory_space<vmem>>, vector<6x64xf32>
    %2 = vector.extract_strided_slice %0 {offsets = [0, 0], sizes = [6, 32], strides = [1, 1]} : vector<6x64xf32> to vector<6x32xf32>
    %3 = vector.extract_strided_slice %0 {offsets = [0, 32], sizes = [6, 32], strides = [1, 1]} : vector<6x64xf32> to vector<6x32xf32>
    %4 = vector.extract_strided_slice %1 {offsets = [0, 0], sizes = [6, 32], strides = [1, 1]} : vector<6x64xf32> to vector<6x32xf32>
    %5 = vector.extract_strided_slice %1 {offsets = [0, 32], sizes = [6, 32], strides = [1, 1]} : vector<6x64xf32> to vector<6x32xf32>
    %c0_3 = arith.constant 0 : index
    %c0_4 = arith.constant 0 : index
    %6 = vector.load %arg3[%c0_3, %c0_4] : memref<6x32xf32, #tpu.memory_space<vmem>>, vector<6x32xf32>
    %cst = arith.constant 5.000000e-01 : f32
    %7 = vector.broadcast %cst : f32 to vector<6x32xf32>
    %8 = arith.mulf %7, %3 : vector<6x32xf32>
    %9 = math.exp %8 : vector<6x32xf32>
    %10 = arith.mulf %6, %9 : vector<6x32xf32>
    %11 = arith.addf %10, %2 : vector<6x32xf32>
    %c0_5 = arith.constant 0 : index
    %c0_6 = arith.constant 0 : index
    %12 = vector.load %arg4[%c0_5, %c0_6] : memref<6x32xf32, #tpu.memory_space<vmem>>, vector<6x32xf32>
    tpu.vector_store %arg4[%c0_5, %c0_6], %11 {strides = array<i32>} : memref<6x32xf32, #tpu.memory_space<vmem>>, vector<6x32xf32>,
    %13 = arith.subf %5, %3 : vector<6x32xf32>
    %cst_7 = arith.constant 5.000000e-01 : f32
    %14 = vector.broadcast %cst_7 : f32 to vector<6x32xf32>
    %15 = arith.mulf %14, %13 : vector<6x32xf32>
    %16 = arith.subf %3, %5 : vector<6x32xf32>
    %17 = math.exp %16 : vector<6x32xf32>
    %cst_8 = arith.constant 5.000000e-01 : f32
    %18 = vector.broadcast %cst_8 : f32 to vector<6x32xf32>
    %19 = arith.mulf %18, %17 : vector<6x32xf32>
    %20 = arith.addf %15, %19 : vector<6x32xf32>
    %21 = arith.subf %2, %4 : vector<6x32xf32>
    %22 = arith.mulf %21, %21 : vector<6x32xf32>
    %cst_9 = arith.constant 5.000000e-01 : f32
    %23 = vector.broadcast %cst_9 : f32 to vector<6x32xf32>
    %24 = arith.mulf %23, %22 : vector<6x32xf32>
    %cst_10 = arith.constant 0.000000e+00 : f32
    %25 = vector.broadcast %cst_10 : f32 to vector<6x32xf32>
    %26 = arith.subf %25, %5 : vector<6x32xf32>
    %27 = math.exp %26 : vector<6x32xf32>
    %28 = arith.mulf %24, %27 : vector<6x32xf32>
    %29 = arith.addf %20, %28 : vector<6x32xf32>
    %cst_11 = arith.constant 5.000000e-01 : f32
    %30 = vector.broadcast %cst_11 : f32 to vector<6x32xf32>
    %31 = arith.subf %29, %30 : vector<6x32xf32>
    %32 = vector.shape_cast %31 : vector<6x32xf32> to vector<1x6x32xf32>
    %cst_12 = arith.constant dense<0.000000e+00> : vector<1xf32>
    %33 = vector.multi_reduction <add>, %32, %cst_12 [1, 2] : vector<1x6x32xf32> to vector<1xf32>
    %34 = vector.shape_cast %33 : vector<1xf32> to vector<1x1x1xf32>
    %35 = vector.extract %34[0, 0, 0] : f32 from vector<1x1x1xf32>
    %cst_13 = arith.constant 1.920000e+02 : f32
    %36 = arith.divf %35, %cst_13 : f32
    %c0_14 = arith.constant 0 : index
    %37 = memref.load %arg5[%c0_14] : memref<1xf32, #tpu.memory_space<smem>>
    memref.store %36, %arg5[%c0_14] : memref<1xf32, #tpu.memory_space<smem>>
    return
  }
  func.func @transform_0(%arg0: i32) -> (i32, i32) {
    %c0_i32 = arith.constant 0 : i32
    %c0_i32_0 = arith.constant 0 : i32
    %c0_i32_1 = arith.constant 0 : i32
    return %c0_i32, %c0_i32_0 : i32, i32
  }
  func.func @transform_1(%arg0: i32) -> (i32, i32) {
    %c0_i32 = arith.constant 0 : i32
    %c0_i32_0 = arith.constant 0 : i32
    %c0_i32_1 = arith.constant 0 : i32
    return %c0_i32, %c0_i32_0 : i32, i32
  }
  func.func @transform_2(%arg0: i32) -> (i32, i32) {
    %c0_i32 = arith.constant 0 : i32
    %c0_i32_0 = arith.constant 0 : i32
    %c0_i32_1 = arith.constant 0 : i32
    return %c0_i32, %c0_i32_0 : i32, i32
  }
  func.func @transform_3(%arg0: i32) -> (i32, i32) {
    %c0_i32 = arith.constant 0 : i32
    %c0_i32_0 = arith.constant 0 : i32
    %c0_i32_1 = arith.constant 0 : i32
    return %c0_i32, %c0_i32_0 : i32, i32
  }
  func.func @transform_4(%arg0: i32) -> i32 {
    %c0_i32 = arith.constant 0 : i32
    %c0_i32_0 = arith.constant 0 : i32
    return %c0_i32 : i32
  }
}

</mosaic_0001>

<llo_original>
// kernel: image_learned_prior_forward.5
$region0: #{image_learned_prior_forward.5}
  #allocation0 [shape = 'u32[]', space=smem, size = 0x4, offset = 0x4, fixed_abs, tag = 'smem constant byte address 0x4 - core index']
  #allocation1 [shape = 'u32[144,128]{1,0:T(1,128)}', space=vmem, size = 0x12000, scoped, tag = 'internal scratch']
  %s0 = inlined_call_operand.vmem [shape: f32[6,64], index: 0, kind: input, shape index: {}]
  %s1 = inlined_call_operand.vmem [shape: f32[6,64], index: 1, kind: input, shape index: {}]
  %s2 = inlined_call_operand.vmem [shape: f32[6,32], index: 2, kind: input, shape index: {}]
  %s3 = inlined_call_operand.vmem [shape: f32[6,32], index: 3, kind: output, shape index: {0}]
  %s4 = inlined_call_operand.hbm [shape: f32[1], index: 4, kind: output, shape index: {1}]
  %5 = xla_tuple %s3, %s4
  %s6 = sld [smem:[#allocation0]]
  $region30: #{image_learned_prior_forward.5} parent=0
    _
  %s8 = ssub.s32 1, %s6
  %s9 = scalar_select 0, %s8, %s6
  $region1: #{image_learned_prior_forward.5} parent=0
    #allocation2 [shape = 'u8[512]{0}', space=smem, size = 0x200, scoped, tag = 'output window, operand 1, single buffered']
    #allocation3 [shape = 's32[1]{0}', space=sflag, size = 0x4, scoped, tag = 'scoped memory for image_learned_prior_forward.5']
    %10 = vsyncpa [#allocation3], 0
    // Predicated region
    $region2: #{image_learned_prior_forward.5} parent=1 // pred_check
      _
    $region3: #{image_learned_prior_forward.5} parent=1 // pred_check_branch
      %12 = sbr.rel (0) target = $region5
    $region4: #{image_learned_prior_forward.5} parent=1 // pred_region
      _
    $region5: #{image_learned_prior_forward.5} parent=1 // pred_fallthru
      _
    // Predicated region
    $region6: #{image_learned_prior_forward.5} parent=1 // pred_check
      _
    $region7: #{image_learned_prior_forward.5} parent=1 // pred_check_branch
      %14 = sbr.rel (0) target = $region9
    $region8: #{image_learned_prior_forward.5} parent=1 // pred_region
      _
    $region9: #{image_learned_prior_forward.5} parent=1 // pred_fallthru
      _
    // Predicated region
    $region10: #{image_learned_prior_forward.5} parent=1 // pred_check
      _
    $region11: #{image_learned_prior_forward.5} parent=1 // pred_check_branch
      %16 = sbr.rel (0) target = $region13
    $region12: #{image_learned_prior_forward.5} parent=1 // pred_region
      _
    $region13: #{image_learned_prior_forward.5} parent=1 // pred_fallthru
      _
    %v17 = vld [vmem:[%s0] sm:$0x3f]
    %v18 = vld [vmem:[%s1] sm:$0x3f]
    %v19 = vld [vmem:[%s2] sm:$0x3f]
    %v20 = vmul.f32 %v17, 0.5
    %v21 = vmul.f32 %v20, 1.442695
    %v22 = vpow.pop %v21
    %24 = vrot.lane.b32.xlu0 %v22, 96
    %v25 = vpop.permute.xlu0 %24
    %v27 = vmul.f32 %v19, %v25
    %v28 = vadd.f32 %v27, %v17
    %vm29 = vcmask 259072
    %30 = vst.msk [vmem:[%s3] sm:$0x3f] %vm29, %v28
    %v31 = vsub.f32 %v18, %v17
    %v32 = vmul.f32 %v31, 0.5
    %v33 = vsub.f32 %v17, %v18
    %v34 = vmul.f32 %v33, 1.442695
    %v35 = vpow.pop %v34
    %v36 = vmul.f32 %v35, 0.5
    %v37 = vadd.f32 %v32, %v36
    %v38 = vmul.f32 %v33, %v33
    %v39 = vmul.f32 %v38, 0.5
    %v40 = vsub.f32 0.0, %v18
    %v41 = vmul.f32 %v40, 1.442695
    %v42 = vpow.pop %v41
    %44 = vrot.lane.b32.xlu0 %v42, 96
    %v45 = vpop.permute.xlu0 %44
    %v47 = vmul.f32 %v39, %v45
    %49 = vrot.lane.b32.xlu0 %v47, 32
    %v50 = vpop.permute.xlu0 %49
    %v52 = vadd.f32 %v37, %v50
    %v53 = vsub.f32 %v52, 0.5
    %55 = vrot.lane.b32.xlu0 %v53, 96
    %v56 = vpop.permute.xlu0 %55
    %v58 = vsel %vm29, %v56, 0.0
    %59 = vadd.xlane.f32.xlu0 %v58
    %v60 = vpop.xlane.xlu0 %59
    %v61 = vrot.slane %v60, 4
    %v62 = vadd.f32 %v60, %v61
    %v63 = vrot.slane %v62, 2
    %v64 = vadd.f32 %v62, %v63
    %v65 = vrot.slane %v64, 1
    %v66 = vadd.f32 %v64, %v65
    %s67 = vtos %v66
    %v68 = vrcp.pop 192.0
    %s69 = vtos %v68
    %s70 = smul.f32 %s67, %s69
    %s71 = scalar_lea.smem [#allocation2], 0
    %72 = sst [smem:[%s71]] %s70
    // Predicated region
    $region14: #{image_learned_prior_forward.5} parent=1 // pred_check
      _
    $region15: #{image_learned_prior_forward.5} parent=1 // pred_check_branch
      %74 = sbr.rel (0) target = $region17
    $region16: #{image_learned_prior_forward.5} parent=1 // pred_region
      _
    $region17: #{image_learned_prior_forward.5} parent=1 // pred_fallthru
      _
    // Predicated region
    $region18: #{image_learned_prior_forward.5} parent=1 // pred_check
      _
    $region19: #{image_learned_prior_forward.5} parent=1 // pred_check_branch
      %76 = sbr.rel (0) target = $region21
    $region20: #{image_learned_prior_forward.5} parent=1 // pred_region
      %s78 = ssub.s32 16, 16
      %79 = vsyncadd [#allocation3], %s78
      %82 = dma.smem_to_hbm [#allocation2], 16, %s4, [#allocation3]
    $region21: #{image_learned_prior_forward.5} parent=1 // pred_fallthru
      _
    // Predicated region
    $region22: #{image_learned_prior_forward.5} parent=1 // pred_check
      _
    $region23: #{image_learned_prior_forward.5} parent=1 // pred_check_branch
      %84 = sbr.rel (0) target = $region25
    $region24: #{image_learned_prior_forward.5} parent=1 // pred_region
      _
    $region25: #{image_learned_prior_forward.5} parent=1 // pred_fallthru
      _
    // Predicated region
    $region26: #{image_learned_prior_forward.5} parent=1 // pred_check
      _
    $region27: #{image_learned_prior_forward.5} parent=1 // pred_check_branch
      %86 = sbr.rel (0) target = $region29
    $region28: #{image_learned_prior_forward.5} parent=1 // pred_region
      %87 = dma.done [#allocation3], 16
    $region29: #{image_learned_prior_forward.5} parent=1 // pred_fallthru
      _
    %88 = sfence
    %89 = vsyncpa [#allocation3], 1

// kernel: image_learned_prior_forward.4
$region0: #{image_learned_prior_forward.4}
  #allocation0 [shape = 'u32[]', space=smem, size = 0x4, offset = 0x4, fixed_abs, tag = 'smem constant byte address 0x4 - core index']
  #allocation1 [shape = 'u32[144,128]{1,0:T(1,128)}', space=vmem, size = 0x12000, scoped, tag = 'internal scratch']
  #allocation2 [shape = 'f32[8,128]{1,0:T(8,128)}', space=vmem, size = 0x1000, scoped, tag = 'scratch operand']
  #allocation3 [shape = 'f32[8,32]{1,0:T(8,128)}', space=vmem, size = 0x1000, scoped, tag = 'scratch operand']
  %s0 = inlined_call_operand.vmem [shape: bf16[8,32], index: 0, kind: input, shape index: {}]
  %s1 = inlined_call_operand.vmem [shape: bf16[2,32,32], index: 1, kind: input, shape index: {}]
  %s2 = inlined_call_operand.vmem [shape: f32[2,1,32], index: 2, kind: input, shape index: {}]
  %s3 = inlined_call_operand.vmem [shape: bf16[2,32,128], index: 3, kind: input, shape index: {}]
  %s4 = inlined_call_operand.vmem [shape: f32[2,1,128], index: 4, kind: input, shape index: {}]
  %s5 = inlined_call_operand.vmem [shape: bf16[2,32,128], index: 5, kind: input, shape index: {}]
  %s6 = inlined_call_operand.vmem [shape: bf16[2,32,64], index: 6, kind: input, shape index: {}]
  %s7 = inlined_call_operand.vmem [shape: f32[2,1,64], index: 7, kind: input, shape index: {}]
  %s8 = inlined_call_operand.vmem [shape: f32[2,8,64], index: 8, kind: output, shape index: {}]
  %s9 = sld [smem:[#allocation0]]
  $region65: #{image_learned_prior_forward.4} parent=0
    _
  %s11 = ssub.s32 1, %s9
  %s12 = scalar_select 0, %s11, %s9
  loop: start=0, step=1, limit=4
  $region2: #{image_learned_prior_forward.4} parent=0 // loop_pre_header
    _
  $region3: #{image_learned_prior_forward.4} parent=0 // loop_header
    %s14 = sphi 0, %s18
    %p15 = scmp.ge.s32.totalorder %s14, 4
    %s22 = sphi 0, %s22
    %s24 = sphi 0, %s22
    %s25 = sphi 0, %s24
    %s39 = sphi 0, %s25
    %s45 = sphi 0, %s47
    %s48 = sphi 0, %s45
    %s49 = sphi 0, %s48
    %s65 = sphi 0, %s49
    %s71 = sphi 0, %s73
    %s74 = sphi 0, %s71
    %s75 = sphi 0, %s74
    %s91 = sphi 0, %s75
    %s97 = sphi 0, %s99
    %s100 = sphi 0, %s97
    %s101 = sphi 0, %s100
    %s117 = sphi 0, %s101
    %s123 = sphi 0, %s125
    %s126 = sphi 0, %s123
    %s127 = sphi 0, %s126
    %s143 = sphi 0, %s127
    %s149 = sphi 0, %s151
    %s152 = sphi 0, %s149
    %s153 = sphi 0, %s152
    %s169 = sphi 0, %s153
    %s175 = sphi 0, %s177
    %s178 = sphi 0, %s175
    %s179 = sphi 0, %s178
    %s195 = sphi 0, %s179
    %s201 = sphi 0, %s203
    %s204 = sphi 0, %s201
    %s205 = sphi 0, %s204
    %s221 = sphi 0, %s205
    %s227 = sphi 0, %s229
    %s230 = sphi 0, %s227
    %s231 = sphi 0, %s230
    %s247 = sphi 0, %s231
  $region4: #{image_learned_prior_forward.4} parent=0 // loop_header_branch
    %17 = sbr.rel (%p15) target = $region8
  $region5: #{image_learned_prior_forward.4} parent=0 // loop_body
    %s19 = ssub.s32 %s14, 1
    %s20 = ssub.s32 %s14, 2
    %s21 = sadd.s32 %s14, 1
    %s23 = sadd.s32 %s22, 1
    %p26 = scmp.eq.s32.totalorder %s14, 1
    %p27 = scmp.ne.s32.totalorder %s22, %s24
    %p28 = scmp.eq.s32.totalorder %s14, 0
    %p29 = por %p27, %p28
    %p30 = scmp.ne.s32.totalorder %s22, %s24
    %p31 = scmp.eq.s32.totalorder %s19, 1
    %p32 = por %p30, %p31
    %p33 = scmp.ne.s32.totalorder %s24, %s25
    %p34 = scmp.eq.s32.totalorder %s19, 0
    %p35 = por %p33, %p34
    %p36 = scmp.ne.s32.totalorder %s24, %s25
    %p37 = scmp.eq.s32.totalorder %s20, 1
    %p38 = por %p36, %p37
    %p40 = scmp.ne.s32.totalorder %s25, %s39
    %p41 = scmp.eq.s32.totalorder %s20, 0
    %p42 = por %p40, %p41
    %s43 = ssub.s32 %s14, %s21
    %p44 = scmp.eq.s32.totalorder %s43, 0
    %s46 = sadd.s32 %s45, 1
    %s47 = scalar_select %p44, %s45, %s46
    %p50 = pneg %p44
    %p51 = scmp.eq.s32.totalorder %s14, 1
    %p52 = por %p50, %p51
    %p53 = scmp.ne.s32.totalorder %s45, %s48
    %p54 = scmp.eq.s32.totalorder %s14, 0
    %p55 = por %p53, %p54
    %p56 = scmp.ne.s32.totalorder %s45, %s48
    %p57 = scmp.eq.s32.totalorder %s19, 1
    %p58 = por %p56, %p57
    %p59 = scmp.ne.s32.totalorder %s48, %s49
    %p60 = scmp.eq.s32.totalorder %s19, 0
    %p61 = por %p59, %p60
    %p62 = scmp.ne.s32.totalorder %s48, %s49
    %p63 = scmp.eq.s32.totalorder %s20, 1
    %p64 = por %p62, %p63
    %p66 = scmp.ne.s32.totalorder %s49, %s65
    %p67 = scmp.eq.s32.totalorder %s20, 0
    %p68 = por %p66, %p67
    %s69 = ssub.s32 %s14, %s21
    %p70 = scmp.eq.s32.totalorder %s69, 0
    %s72 = sadd.s32 %s71, 1
    %s73 = scalar_select %p70, %s71, %s72
    %p76 = pneg %p70
    %p77 = scmp.eq.s32.totalorder %s14, 1
    %p78 = por %p76, %p77
    %p79 = scmp.ne.s32.totalorder %s71, %s74
    %p80 = scmp.eq.s32.totalorder %s14, 0
    %p81 = por %p79, %p80
    %p82 = scmp.ne.s32.totalorder %s71, %s74
    %p83 = scmp.eq.s32.totalorder %s19, 1
    %p84 = por %p82, %p83
    %p85 = scmp.ne.s32.totalorder %s74, %s75
    %p86 = scmp.eq.s32.totalorder %s19, 0
    %p87 = por %p85, %p86
    %p88 = scmp.ne.s32.totalorder %s74, %s75
    %p89 = scmp.eq.s32.totalorder %s20, 1
    %p90 = por %p88, %p89
    %p92 = scmp.ne.s32.totalorder %s75, %s91
    %p93 = scmp.eq.s32.totalorder %s20, 0
    %p94 = por %p92, %p93
    %s95 = ssub.s32 %s14, %s21
    %p96 = scmp.eq.s32.totalorder %s95, 0
    %s98 = sadd.s32 %s97, 1
    %s99 = scalar_select %p96, %s97, %s98
    %p102 = pneg %p96
    %p103 = scmp.eq.s32.totalorder %s14, 1
    %p104 = por %p102, %p103
    %p105 = scmp.ne.s32.totalorder %s97, %s100
    %p106 = scmp.eq.s32.totalorder %s14, 0
    %p107 = por %p105, %p106
    %p108 = scmp.ne.s32.totalorder %s97, %s100
    %p109 = scmp.eq.s32.totalorder %s19, 1
    %p110 = por %p108, %p109
    %p111 = scmp.ne.s32.totalorder %s100, %s101
    %p112 = scmp.eq.s32.totalorder %s19, 0
    %p113 = por %p111, %p112
    %p114 = scmp.ne.s32.totalorder %s100, %s101
    %p115 = scmp.eq.s32.totalorder %s20, 1
    %p116 = por %p114, %p115
    %p118 = scmp.ne.s32.totalorder %s101, %s117
    %p119 = scmp.eq.s32.totalorder %s20, 0
    %p120 = por %p118, %p119
    %s121 = ssub.s32 %s14, %s21
    %p122 = scmp.eq.s32.totalorder %s121, 0
    %s124 = sadd.s32 %s123, 1
    %s125 = scalar_select %p122, %s123, %s124
    %p128 = pneg %p122
    %p129 = scmp.eq.s32.totalorder %s14, 1
    %p130 = por %p128, %p129
    %p131 = scmp.ne.s32.totalorder %s123, %s126
    %p132 = scmp.eq.s32.totalorder %s14, 0
    %p133 = por %p131, %p132
    %p134 = scmp.ne.s32.totalorder %s123, %s126
    %p135 = scmp.eq.s32.totalorder %s19, 1
    %p136 = por %p134, %p135
    %p137 = scmp.ne.s32.totalorder %s126, %s127
    %p138 = scmp.eq.s32.totalorder %s19, 0
    %p139 = por %p137, %p138
    %p140 = scmp.ne.s32.totalorder %s126, %s127
    %p141 = scmp.eq.s32.totalorder %s20, 1
    %p142 = por %p140, %p141
    %p144 = scmp.ne.s32.totalorder %s127, %s143
    %p145 = scmp.eq.s32.totalorder %s20, 0
    %p146 = por %p144, %p145
    %s147 = ssub.s32 %s14, %s21
    %p148 = scmp.eq.s32.totalorder %s147, 0
    %s150 = sadd.s32 %s149, 1
    %s151 = scalar_select %p148, %s149, %s150
    %p154 = pneg %p148
    %p155 = scmp.eq.s32.totalorder %s14, 1
    %p156 = por %p154, %p155
    %p157 = scmp.ne.s32.totalorder %s149, %s152
    %p158 = scmp.eq.s32.totalorder %s14, 0
    %p159 = por %p157, %p158
    %p160 = scmp.ne.s32.totalorder %s149, %s152
    %p161 = scmp.eq.s32.totalorder %s19, 1
    %p162 = por %p160, %p161
    %p163 = scmp.ne.s32.totalorder %s152, %s153
    %p164 = scmp.eq.s32.totalorder %s19, 0
    %p165 = por %p163, %p164
    %p166 = scmp.ne.s32.totalorder %s152, %s153
    %p167 = scmp.eq.s32.totalorder %s20, 1
    %p168 = por %p166, %p167
    %p170 = scmp.ne.s32.totalorder %s153, %s169
    %p171 = scmp.eq.s32.totalorder %s20, 0
    %p172 = por %p170, %p171
    %s173 = ssub.s32 %s14, %s21
    %p174 = scmp.eq.s32.totalorder %s173, 0
    %s176 = sadd.s32 %s175, 1
    %s177 = scalar_select %p174, %s175, %s176
    %p180 = pneg %p174
    %p181 = scmp.eq.s32.totalorder %s14, 1
    %p182 = por %p180, %p181
    %p183 = scmp.ne.s32.totalorder %s175, %s178
    %p184 = scmp.eq.s32.totalorder %s14, 0
    %p185 = por %p183, %p184
    %p186 = scmp.ne.s32.totalorder %s175, %s178
    %p187 = scmp.eq.s32.totalorder %s19, 1
    %p188 = por %p186, %p187
    %p189 = scmp.ne.s32.totalorder %s178, %s179
    %p190 = scmp.eq.s32.totalorder %s19, 0
    %p191 = por %p189, %p190
    %p192 = scmp.ne.s32.totalorder %s178, %s179
    %p193 = scmp.eq.s32.totalorder %s20, 1
    %p194 = por %p192, %p193
    %p196 = scmp.ne.s32.totalorder %s179, %s195
    %p197 = scmp.eq.s32.totalorder %s20, 0
    %p198 = por %p196, %p197
    %s199 = ssub.s32 %s14, %s21
    %p200 = scmp.eq.s32.totalorder %s199, 0
    %s202 = sadd.s32 %s201, 1
    %s203 = scalar_select %p200, %s201, %s202
    %p206 = pneg %p200
    %p207 = scmp.eq.s32.totalorder %s14, 1
    %p208 = por %p206, %p207
    %p209 = scmp.ne.s32.totalorder %s201, %s204
    %p210 = scmp.eq.s32.totalorder %s14, 0
    %p211 = por %p209, %p210
    %p212 = scmp.ne.s32.totalorder %s201, %s204
    %p213 = scmp.eq.s32.totalorder %s19, 1
    %p214 = por %p212, %p213
    %p215 = scmp.ne.s32.totalorder %s204, %s205
    %p216 = scmp.eq.s32.totalorder %s19, 0
    %p217 = por %p215, %p216
    %p218 = scmp.ne.s32.totalorder %s204, %s205
    %p219 = scmp.eq.s32.totalorder %s20, 1
    %p220 = por %p218, %p219
    %p222 = scmp.ne.s32.totalorder %s205, %s221
    %p223 = scmp.eq.s32.totalorder %s20, 0
    %p224 = por %p222, %p223
    %s225 = ssub.s32 %s14, %s21
    %p226 = scmp.eq.s32.totalorder %s225, 0
    %s228 = sadd.s32 %s227, 1
    %s229 = scalar_select %p226, %s227, %s228
    %p232 = pneg %p226
    %p233 = scmp.eq.s32.totalorder %s14, 1
    %p234 = por %p232, %p233
    %p235 = scmp.ne.s32.totalorder %s227, %s230
    %p236 = scmp.eq.s32.totalorder %s14, 0
    %p237 = por %p235, %p236
    %p238 = scmp.ne.s32.totalorder %s227, %s230
    %p239 = scmp.eq.s32.totalorder %s19, 1
    %p240 = por %p238, %p239
    %p241 = scmp.ne.s32.totalorder %s230, %s231
    %p242 = scmp.eq.s32.totalorder %s19, 0
    %p243 = por %p241, %p242
    %p244 = scmp.ne.s32.totalorder %s230, %s231
    %p245 = scmp.eq.s32.totalorder %s20, 1
    %p246 = por %p244, %p245
    %p248 = scmp.ne.s32.totalorder %s231, %s247
    %p249 = scmp.eq.s32.totalorder %s20, 0
    %p250 = por %p248, %p249
    %p251 = scmp.le.s32.totalorder 1, %s14
    %p252 = scmp.lt.s32.totalorder %s14, 3
    %p253 = pnand %p251, %p252
    %p254 = pneg %p253
    // Predicated region
    $region9: #{image_learned_prior_forward.4} parent=5 // pred_check
      _
    $region10: #{image_learned_prior_forward.4} parent=5 // pred_check_branch
      %256 = sbr.rel (%p253) target = $region12
    $region11: #{image_learned_prior_forward.4} parent=5 // pred_region
      %s257 = ssub.s32 %s14, 1
      // Predicated region
      $region13: #{image_learned_prior_forward.4} parent=11 // pred_check
        %p258 = pneg %p35
      $region14: #{image_learned_prior_forward.4} parent=11 // pred_check_branch
        %260 = sbr.rel (%p258) target = $region16
      $region15: #{image_learned_prior_forward.4} parent=11 // pred_region
        _
      $region16: #{image_learned_prior_forward.4} parent=11 // pred_fallthru
        _
    $region12: #{image_learned_prior_forward.4} parent=5 // pred_fallthru
      _
    %p261 = scmp.lt.s32.totalorder %s14, 2
    // Predicated region
    $region17: #{image_learned_prior_forward.4} parent=5 // pred_check
      %p262 = pneg %p261
    $region18: #{image_learned_prior_forward.4} parent=5 // pred_check_branch
      %264 = sbr.rel (%p262) target = $region20
    $region19: #{image_learned_prior_forward.4} parent=5 // pred_region
      // Predicated region
      $region21: #{image_learned_prior_forward.4} parent=19 // pred_check
        %p265 = pneg %p55
      $region22: #{image_learned_prior_forward.4} parent=19 // pred_check_branch
        %267 = sbr.rel (%p265) target = $region24
      $region23: #{image_learned_prior_forward.4} parent=19 // pred_region
        %p268 = scmp.lt.s32.totalorder %s14, 1
        %s269 = scalar_select %p268, %s14, 1
        %s270 = smul.addr %s269, 4
        %s271 = smul.addr %s270, 4
        %s272 = scalar_lea.vmem %s1, %s271
      $region24: #{image_learned_prior_forward.4} parent=19 // pred_fallthru
        _
      // Predicated region
      $region25: #{image_learned_prior_forward.4} parent=19 // pred_check
        %p273 = pneg %p81
      $region26: #{image_learned_prior_forward.4} parent=19 // pred_check_branch
        %275 = sbr.rel (%p273) target = $region28
      $region27: #{image_learned_prior_forward.4} parent=19 // pred_region
        %p276 = scmp.lt.s32.totalorder %s14, 1
        %s277 = scalar_select %p276, %s14, 1
        %s278 = scalar_lea.vmem %s2, %s277
      $region28: #{image_learned_prior_forward.4} parent=19 // pred_fallthru
        _
      // Predicated region
      $region29: #{image_learned_prior_forward.4} parent=19 // pred_check
        %p279 = pneg %p107
      $region30: #{image_learned_prior_forward.4} parent=19 // pred_check_branch
        %281 = sbr.rel (%p279) target = $region32
      $region31: #{image_learned_prior_forward.4} parent=19 // pred_region
        %p282 = scmp.lt.s32.totalorder %s14, 1
        %s283 = scalar_select %p282, %s14, 1
        %s284 = smul.addr %s283, 4
        %s285 = smul.addr %s284, 4
        %s286 = scalar_lea.vmem %s3, %s285
      $region32: #{image_learned_prior_forward.4} parent=19 // pred_fallthru
        _
      // Predicated region
      $region33: #{image_learned_prior_forward.4} parent=19 // pred_check
        %p287 = pneg %p133
      $region34: #{image_learned_prior_forward.4} parent=19 // pred_check_branch
        %289 = sbr.rel (%p287) target = $region36
      $region35: #{image_learned_prior_forward.4} parent=19 // pred_region
        %p290 = scmp.lt.s32.totalorder %s14, 1
        %s291 = scalar_select %p290, %s14, 1
        %s292 = scalar_lea.vmem %s4, %s291
      $region36: #{image_learned_prior_forward.4} parent=19 // pred_fallthru
        _
      // Predicated region
      $region37: #{image_learned_prior_forward.4} parent=19 // pred_check
        %p293 = pneg %p159
      $region38: #{image_learned_prior_forward.4} parent=19 // pred_check_branch
        %295 = sbr.rel (%p293) target = $region40
      $region39: #{image_learned_prior_forward.4} parent=19 // pred_region
        %p296 = scmp.lt.s32.totalorder %s14, 1
        %s297 = scalar_select %p296, %s14, 1
        %s298 = smul.addr %s297, 4
        %s299 = smul.addr %s298, 4
        %s300 = scalar_lea.vmem %s5, %s299
      $region40: #{image_learned_prior_forward.4} parent=19 // pred_fallthru
        _
      // Predicated region
      $region41: #{image_learned_prior_forward.4} parent=19 // pred_check
        %p301 = pneg %p185
      $region42: #{image_learned_prior_forward.4} parent=19 // pred_check_branch
        %303 = sbr.rel (%p301) target = $region44
      $region43: #{image_learned_prior_forward.4} parent=19 // pred_region
        %p304 = scmp.lt.s32.totalorder %s14, 1
        %s305 = scalar_select %p304, %s14, 1
        %s306 = smul.addr %s305, 4
        %s307 = smul.addr %s306, 4
        %s308 = scalar_lea.vmem %s6, %s307
      $region44: #{image_learned_prior_forward.4} parent=19 // pred_fallthru
        _
      // Predicated region
      $region45: #{image_learned_prior_forward.4} parent=19 // pred_check
        %p309 = pneg %p211
      $region46: #{image_learned_prior_forward.4} parent=19 // pred_check_branch
        %311 = sbr.rel (%p309) target = $region48
      $region47: #{image_learned_prior_forward.4} parent=19 // pred_region
        %p312 = scmp.lt.s32.totalorder %s14, 1
        %s313 = scalar_select %p312, %s14, 1
        %s314 = scalar_lea.vmem %s7, %s313
      $region48: #{image_learned_prior_forward.4} parent=19 // pred_fallthru
        _
    $region20: #{image_learned_prior_forward.4} parent=5 // pred_fallthru
      _
    %p315 = scmp.le.s32.totalorder 1, %s14
    %p316 = scmp.lt.s32.totalorder %s14, 3
    %p317 = pnand %p315, %p316
    %p318 = pneg %p317
    // Predicated region
    $region49: #{image_learned_prior_forward.4} parent=5 // pred_check
      _
    $region50: #{image_learned_prior_forward.4} parent=5 // pred_check_branch
      %320 = sbr.rel (%p317) target = $region52
    $region51: #{image_learned_prior_forward.4} parent=5 // pred_region
      %s321 = ssub.s32 %s14, 1
      %p322 = pneg %p35
      %p323 = pneg %p32
      %p324 = scmp.lt.s32.totalorder %s19, 1
      %s325 = scalar_select %p324, %s19, 1
      %s326 = smul.addr %s325, 4
      %s327 = smul.addr %s326, 4
      %s328 = scalar_lea.vmem %s1, %s327
      %p329 = pneg %p61
      %p330 = pneg %p58
      %p331 = scmp.lt.s32.totalorder %s19, 1
      %s332 = scalar_select %p331, %s19, 1
      %s333 = scalar_lea.vmem %s2, %s332
      %p334 = pneg %p87
      %p335 = pneg %p84
      %p336 = scmp.lt.s32.totalorder %s19, 1
      %s337 = scalar_select %p336, %s19, 1
      %s338 = smul.addr %s337, 4
      %s339 = smul.addr %s338, 4
      %s340 = scalar_lea.vmem %s3, %s339
      %p341 = pneg %p113
      %p342 = pneg %p110
      %p343 = scmp.lt.s32.totalorder %s19, 1
      %s344 = scalar_select %p343, %s19, 1
      %s345 = scalar_lea.vmem %s4, %s344
      %p346 = pneg %p139
      %p347 = pneg %p136
      %p348 = scmp.lt.s32.totalorder %s19, 1
      %s349 = scalar_select %p348, %s19, 1
      %s350 = smul.addr %s349, 4
      %s351 = smul.addr %s350, 4
      %s352 = scalar_lea.vmem %s5, %s351
      %p353 = pneg %p165
      %p354 = pneg %p162
      %p355 = scmp.lt.s32.totalorder %s19, 1
      %s356 = scalar_select %p355, %s19, 1
      %s357 = smul.addr %s356, 4
      %s358 = smul.addr %s357, 4
      %s359 = scalar_lea.vmem %s6, %s358
      %p360 = pneg %p191
      %p361 = pneg %p188
      %p362 = scmp.lt.s32.totalorder %s19, 1
      %s363 = scalar_select %p362, %s19, 1
      %s364 = scalar_lea.vmem %s7, %s363
      %p365 = pneg %p217
      %p366 = pneg %p214
      %p367 = pneg %p243
      %p368 = pneg %p240
      %p369 = scmp.lt.s32.totalorder %s19, 1
      %s370 = scalar_select %p369, %s19, 1
      %s371 = smul.addr %s370, 8
      %s372 = scalar_lea.vmem %s8, %s371
      %p373 = scmp.lt.s32.totalorder %s19, 1
      %s374 = scalar_select %p373, %s19, 1
      %s375 = smul.addr %s374, 4
      %s376 = smul.addr %s375, 4
      %s377 = scalar_lea.vmem %s1, %s376
      %p378 = scmp.lt.s32.totalorder %s19, 1
      %s379 = scalar_select %p378, %s19, 1
      %s380 = scalar_lea.vmem %s2, %s379
      %p381 = scmp.lt.s32.totalorder %s19, 1
      %s382 = scalar_select %p381, %s19, 1
      %s383 = smul.addr %s382, 4
      %s384 = smul.addr %s383, 4
      %s385 = scalar_lea.vmem %s3, %s384
      %p386 = scmp.lt.s32.totalorder %s19, 1
      %s387 = scalar_select %p386, %s19, 1
      %s388 = scalar_lea.vmem %s4, %s387
      %p389 = scmp.lt.s32.totalorder %s19, 1
      %s390 = scalar_select %p389, %s19, 1
      %s391 = smul.addr %s390, 4
      %s392 = smul.addr %s391, 4
      %s393 = scalar_lea.vmem %s5, %s392
      %p394 = scmp.lt.s32.totalorder %s19, 1
      %s395 = scalar_select %p394, %s19, 1
      %s396 = smul.addr %s395, 4
      %s397 = smul.addr %s396, 4
      %s398 = scalar_lea.vmem %s6, %s397
      %p399 = scmp.lt.s32.totalorder %s19, 1
      %s400 = scalar_select %p399, %s19, 1
      %s401 = scalar_lea.vmem %s7, %s400
      %p402 = scmp.lt.s32.totalorder %s19, 1
      %s403 = scalar_select %p402, %s19, 1
      %s404 = smul.addr %s403, 8
      %s405 = scalar_lea.vmem %s8, %s404
      %v407 = vld [vmem:[%s0] sm:$0xf]
      %v408 = vld [vmem:[%s377] sm:$0xf]
      %v409 = vld [vmem:[%s377 + $0x4] sm:$0xf]
      %v410 = vld [vmem:[%s377 + $0x8] sm:$0xf]
      %v411 = vld [vmem:[%s377 + $0xc] sm:$0xf]
      %v412 = vld [vmem:[%s380] sm:$0x1]
      %v414 = vlaneseq
      %v415 = vshrl.u32 %v414, 7
      %v416 = vsub.s32 0, %v415
      %v417 = vrot.slane %v412, %v416
      %v423 = vunpack.c.l.b16 %v408
      %v424 = vunpack.c.l.b16 %v409
      %v425 = vunpack.c.l.b16 %v410
      %v426 = vunpack.c.l.b16 %v411
      %v427 = vpack.c.b16 %v424, %v423
      %v428 = vpack.c.b16 %v426, %v425
      %vm431 = vcmask 261120
      %v433 = vsel %vm431, %v407, 0
      %435 = vmatprep.subr.bf16.mxu0 0
      %436 = vmatpush1.bf16.msra.mxu0 %v427
      %437 = vmatprep.subr.bf16.mxu0 0
      %438 = vmatpush1.bf16.msra.mxu0 %v428
      %439 = vmatprep.subr.bf16.mxu0 0
      %440 = vmatpush1.bf16.msra.mxu0 0
      %441 = vmatprep.subr.bf16.mxu0 0
      %442 = vmatpush1.bf16.msra.mxu0 0
      %443 = vmatprep.subr.bf16.mxu0 0
      %444 = vmatpush1.bf16.msra.mxu0 0
      %445 = vmatprep.subr.bf16.mxu0 0
      %446 = vmatpush1.bf16.msra.mxu0 0
      %447 = vmatprep.subr.bf16.mxu0 0
      %448 = vmatpush1.bf16.msra.mxu0 0
      %449 = vmatprep.subr.bf16.mxu0 0
      %450 = vmatpush1.bf16.msra.mxu0 0
      %451 = vmatprep.subr.bf16.mxu0 0
      %452 = vmatpush1.bf16.msra.mxu0 0
      %453 = vmatprep.subr.bf16.mxu0 0
      %454 = vmatpush1.bf16.msra.mxu0 0
      %455 = vmatprep.subr.bf16.mxu0 0
      %456 = vmatpush1.bf16.msra.mxu0 0
      %457 = vmatprep.subr.bf16.mxu0 0
      %458 = vmatpush1.bf16.msra.mxu0 0
      %459 = vmatprep.subr.bf16.mxu0 0
      %460 = vmatpush1.bf16.msra.mxu0 0
      %461 = vmatprep.subr.bf16.mxu0 0
      %462 = vmatpush1.bf16.msra.mxu0 0
      %463 = vmatprep.subr.bf16.mxu0 0
      %464 = vmatpush1.bf16.msra.mxu0 0
      %465 = vmatprep.subr.bf16.mxu0 0
      %466 = vmatpush1.bf16.msra.mxu0 0
      %467 = vmatprep.mubr.bf16.mxu0 0
      %468 = vmatmul.mubr.bf16.gmra.mrb[0].mxu0 %v433
      %v469 = vpop.f32.mrb[0].mxu0
      %v470 = vadd.f32 %v417, %v469
      %v471 = vpop.f32.mrb[0].mxu0
      %v472 = vpop.f32.mrb[0].mxu0
      %v473 = vpop.f32.mrb[0].mxu0
      %474 = vdwg.mxu0
      %v475 = vpack.c.bf16 %v470, %v470
      %v476 = vld [vmem:[%s385] sm:$0xf]
      %v477 = vld [vmem:[%s385 + $0x4] sm:$0xf]
      %v478 = vld [vmem:[%s385 + $0x8] sm:$0xf]
      %v479 = vld [vmem:[%s385 + $0xc] sm:$0xf]
      %v480 = vld [vmem:[%s388] sm:$0x1]
      %v482 = vlaneseq
      %v483 = vshrl.u32 %v482, 7
      %v484 = vsub.s32 0, %v483
      %v485 = vrot.slane %v480, %v484
      %v491 = vunpack.c.l.b16 %v476
      %v492 = vunpack.c.l.b16 %v477
      %v493 = vunpack.c.l.b16 %v478
      %v494 = vunpack.c.l.b16 %v479
      %v495 = vpack.c.b16 %v492, %v491
      %v496 = vpack.c.b16 %v494, %v493
      %v500 = vsel %vm431, %v475, 0
      %502 = vmatprep.subr.bf16.mxu0 0
      %503 = vmatpush1.bf16.msra.mxu0 %v495
      %504 = vmatprep.subr.bf16.mxu0 0
      %505 = vmatpush1.bf16.msra.mxu0 %v496
      %506 = vmatprep.subr.bf16.mxu0 0
      %507 = vmatpush1.bf16.msra.mxu0 0
      %508 = vmatprep.subr.bf16.mxu0 0
      %509 = vmatpush1.bf16.msra.mxu0 0
      %510 = vmatprep.subr.bf16.mxu0 0
      %511 = vmatpush1.bf16.msra.mxu0 0
      %512 = vmatprep.subr.bf16.mxu0 0
      %513 = vmatpush1.bf16.msra.mxu0 0
      %514 = vmatprep.subr.bf16.mxu0 0
      %515 = vmatpush1.bf16.msra.mxu0 0
      %516 = vmatprep.subr.bf16.mxu0 0
      %517 = vmatpush1.bf16.msra.mxu0 0
      %518 = vmatprep.subr.bf16.mxu0 0
      %519 = vmatpush1.bf16.msra.mxu0 0
      %520 = vmatprep.subr.bf16.mxu0 0
      %521 = vmatpush1.bf16.msra.mxu0 0
      %522 = vmatprep.subr.bf16.mxu0 0
      %523 = vmatpush1.bf16.msra.mxu0 0
      %524 = vmatprep.subr.bf16.mxu0 0
      %525 = vmatpush1.bf16.msra.mxu0 0
      %526 = vmatprep.subr.bf16.mxu0 0
      %527 = vmatpush1.bf16.msra.mxu0 0
      %528 = vmatprep.subr.bf16.mxu0 0
      %529 = vmatpush1.bf16.msra.mxu0 0
      %530 = vmatprep.subr.bf16.mxu0 0
      %531 = vmatpush1.bf16.msra.mxu0 0
      %532 = vmatprep.subr.bf16.mxu0 0
      %533 = vmatpush1.bf16.msra.mxu0 0
      %534 = vmatprep.mubr.bf16.mxu0 0
      %535 = vmatmul.mubr.bf16.gmra.mrb[0].mxu0 %v500
      %v536 = vpop.f32.mrb[0].mxu0
      %v537 = vadd.f32 %v485, %v536
      %v538 = vpop.f32.mrb[0].mxu0
      %v539 = vpop.f32.mrb[0].mxu0
      %v540 = vpop.f32.mrb[0].mxu0
      %541 = vdwg.mxu0
      %542 = vst [vmem:[#allocation2] sm:$0xff] %v537
      %v543 = vld [vmem:[%s393] sm:$0xf]
      %v544 = vld [vmem:[%s393 + $0x4] sm:$0xf]
      %v545 = vld [vmem:[%s393 + $0x8] sm:$0xf]
      %v546 = vld [vmem:[%s393 + $0xc] sm:$0xf]
      %v547 = vld [vmem:[#allocation2] sm:$0x3]
      %v552 = vunpack.c.l.b16 %v543
      %v553 = vunpack.c.l.b16 %v544
      %v554 = vunpack.c.l.b16 %v545
      %v555 = vunpack.c.l.b16 %v546
      %v556 = vpack.c.b16 %v553, %v552
      %v557 = vpack.c.b16 %v555, %v554
      %v561 = vsel %vm431, 0, 0
      %563 = vmatprep.subr.bf16.mxu0 0
      %564 = vmatpush1.bf16.msra.mxu0 %v556
      %565 = vmatprep.subr.bf16.mxu0 0
      %566 = vmatpush1.bf16.msra.mxu0 %v557
      %567 = vmatprep.subr.bf16.mxu0 0
      %568 = vmatpush1.bf16.msra.mxu0 0
      %569 = vmatprep.subr.bf16.mxu0 0
      %570 = vmatpush1.bf16.msra.mxu0 0
      %571 = vmatprep.subr.bf16.mxu0 0
      %572 = vmatpush1.bf16.msra.mxu0 0
      %573 = vmatprep.subr.bf16.mxu0 0
      %574 = vmatpush1.bf16.msra.mxu0 0
      %575 = vmatprep.subr.bf16.mxu0 0
      %576 = vmatpush1.bf16.msra.mxu0 0
      %577 = vmatprep.subr.bf16.mxu0 0
      %578 = vmatpush1.bf16.msra.mxu0 0
      %579 = vmatprep.subr.bf16.mxu0 0
      %580 = vmatpush1.bf16.msra.mxu0 0
      %581 = vmatprep.subr.bf16.mxu0 0
      %582 = vmatpush1.bf16.msra.mxu0 0
      %583 = vmatprep.subr.bf16.mxu0 0
      %584 = vmatpush1.bf16.msra.mxu0 0
      %585 = vmatprep.subr.bf16.mxu0 0
      %586 = vmatpush1.bf16.msra.mxu0 0
      %587 = vmatprep.subr.bf16.mxu0 0
      %588 = vmatpush1.bf16.msra.mxu0 0
      %589 = vmatprep.subr.bf16.mxu0 0
      %590 = vmatpush1.bf16.msra.mxu0 0
      %591 = vmatprep.subr.bf16.mxu0 0
      %592 = vmatpush1.bf16.msra.mxu0 0
      %593 = vmatprep.subr.bf16.mxu0 0
      %594 = vmatpush1.bf16.msra.mxu0 0
      %595 = vmatprep.mubr.bf16.mxu0 0
      %596 = vmatmul.mubr.bf16.gmra.mrb[0].mxu0 %v561
      %v597 = vpop.f32.mrb[0].mxu0
      %v598 = vadd.f32 0.0, %v597
      %v599 = vpop.f32.mrb[0].mxu0
      %v600 = vpop.f32.mrb[0].mxu0
      %v601 = vpop.f32.mrb[0].mxu0
      %602 = vdwg.mxu0
      %v603 = vadd.f32 %v547, %v598
      %v604 = vlaneseq
      %v605 = vand.u32 %v604, 127
      %vm606 = vcmp.ge.s32.totalorder %v605, 64
      %vm607 = vcmp.lt.s32.totalorder %v605, 96
      %vm608 = vmand %vm606, %vm607
      %v609 = vtanh.pop %v603
      %v610 = vxor.u32 %v603, 2147483648
      %v611 = vmul.f32 %v610, 1.442695
      %v612 = vpow.pop %v611
      %v613 = vadd.f32 %v612, 1.0
      %v614 = vrcp.pop %v613
      %v615 = vmul.f32 1.0, %v614
      %v616 = vsel %vm608, %v609, %v615
      %v617 = vmul.f32 %v616, 0.0
      %619 = vrot.lane.b32.xlu0 %v616, 64
      %v620 = vpop.permute.xlu0 %619
      %v622 = vmul.f32 %v616, %v620
      %624 = vrot.lane.b32.xlu0 %v622, 32
      %v625 = vpop.permute.xlu0 %624
      %v627 = vadd.f32 %v617, %v625
      %v628 = vtanh.pop %v627
      %630 = vrot.lane.b32.xlu0 %v628, 64
      %v631 = vpop.permute.xlu0 %630
      %v633 = vmul.f32 %v616, %v631
      %635 = vrot.lane.b32.xlu0 %v633, 32
      %v636 = vpop.permute.xlu0 %635
      %vm638 = vcmask 254976
      %639 = vst.msk [vmem:[#allocation3] sm:$0x3] %vm638, %v636
      %v640 = vld [vmem:[#allocation2 + $0x2] sm:$0x3]
      %v641 = vpack.c.bf16 %v633, %v633
      %643 = vrot.lane.b32.xlu0 %v641, 32
      %v644 = vpop.permute.xlu0 %643
      %v646 = vsel %vm431, %v644, 0
      %648 = vmatprep.subr.bf16.mxu0 0
      %649 = vmatpush1.bf16.msra.mxu0 %v556
      %650 = vmatprep.subr.bf16.mxu0 0
      %651 = vmatpush1.bf16.msra.mxu0 %v557
      %652 = vmatprep.subr.bf16.mxu0 0
      %653 = vmatpush1.bf16.msra.mxu0 0
      %654 = vmatprep.subr.bf16.mxu0 0
      %655 = vmatpush1.bf16.msra.mxu0 0
      %656 = vmatprep.subr.bf16.mxu0 0
      %657 = vmatpush1.bf16.msra.mxu0 0
      %658 = vmatprep.subr.bf16.mxu0 0
      %659 = vmatpush1.bf16.msra.mxu0 0
      %660 = vmatprep.subr.bf16.mxu0 0
      %661 = vmatpush1.bf16.msra.mxu0 0
      %662 = vmatprep.subr.bf16.mxu0 0
      %663 = vmatpush1.bf16.msra.mxu0 0
      %664 = vmatprep.subr.bf16.mxu0 0
      %665 = vmatpush1.bf16.msra.mxu0 0
      %666 = vmatprep.subr.bf16.mxu0 0
      %667 = vmatpush1.bf16.msra.mxu0 0
      %668 = vmatprep.subr.bf16.mxu0 0
      %669 = vmatpush1.bf16.msra.mxu0 0
      %670 = vmatprep.subr.bf16.mxu0 0
      %671 = vmatpush1.bf16.msra.mxu0 0
      %672 = vmatprep.subr.bf16.mxu0 0
      %673 = vmatpush1.bf16.msra.mxu0 0
      %674 = vmatprep.subr.bf16.mxu0 0
      %675 = vmatpush1.bf16.msra.mxu0 0
      %676 = vmatprep.subr.bf16.mxu0 0
      %677 = vmatpush1.bf16.msra.mxu0 0
      %678 = vmatprep.subr.bf16.mxu0 0
      %679 = vmatpush1.bf16.msra.mxu0 0
      %680 = vmatprep.mubr.bf16.mxu0 0
      %681 = vmatmul.mubr.bf16.gmra.mrb[0].mxu0 %v646
      %v682 = vpop.f32.mrb[0].mxu0
      %v683 = vadd.f32 0.0, %v682
      %v684 = vpop.f32.mrb[0].mxu0
      %v685 = vpop.f32.mrb[0].mxu0
      %v686 = vpop.f32.mrb[0].mxu0
      %687 = vdwg.mxu0
      %v688 = vadd.f32 %v640, %v683
      %v689 = vtanh.pop %v688
      %v690 = vxor.u32 %v688, 2147483648
      %v691 = vmul.f32 %v690, 1.442695
      %v692 = vpow.pop %v691
      %v693 = vadd.f32 %v692, 1.0
      %v694 = vrcp.pop %v693
      %v695 = vmul.f32 1.0, %v694
      %v696 = vsel %vm608, %v689, %v695
      %v697 = vmul.f32 %v696, %v627
      %699 = vrot.lane.b32.xlu0 %v696, 64
      %v700 = vpop.permute.xlu0 %699
      %v702 = vmul.f32 %v696, %v700
      %704 = vrot.lane.b32.xlu0 %v702, 32
      %v705 = vpop.permute.xlu0 %704
      %v707 = vadd.f32 %v697, %v705
      %v708 = vtanh.pop %v707
      %710 = vrot.lane.b32.xlu0 %v708, 64
      %v711 = vpop.permute.xlu0 %710
      %v713 = vmul.f32 %v696, %v711
      %715 = vrot.lane.b32.xlu0 %v713, 32
      %v716 = vpop.permute.xlu0 %715
      %718 = vst.msk [vmem:[#allocation3 + $0x2] sm:$0x3] %vm638, %v716
      %v719 = vld [vmem:[#allocation2 + $0x4] sm:$0x3]
      %v720 = vpack.c.bf16 %v713, %v713
      %722 = vrot.lane.b32.xlu0 %v720, 32
      %v723 = vpop.permute.xlu0 %722
      %v725 = vsel %vm431, %v723, 0
      %727 = vmatprep.subr.bf16.mxu0 0
      %728 = vmatpush1.bf16.msra.mxu0 %v556
      %729 = vmatprep.subr.bf16.mxu0 0
      %730 = vmatpush1.bf16.msra.mxu0 %v557
      %731 = vmatprep.subr.bf16.mxu0 0
      %732 = vmatpush1.bf16.msra.mxu0 0
      %733 = vmatprep.subr.bf16.mxu0 0
      %734 = vmatpush1.bf16.msra.mxu0 0
      %735 = vmatprep.subr.bf16.mxu0 0
      %736 = vmatpush1.bf16.msra.mxu0 0
      %737 = vmatprep.subr.bf16.mxu0 0
      %738 = vmatpush1.bf16.msra.mxu0 0
      %739 = vmatprep.subr.bf16.mxu0 0
      %740 = vmatpush1.bf16.msra.mxu0 0
      %741 = vmatprep.subr.bf16.mxu0 0
      %742 = vmatpush1.bf16.msra.mxu0 0
      %743 = vmatprep.subr.bf16.mxu0 0
      %744 = vmatpush1.bf16.msra.mxu0 0
      %745 = vmatprep.subr.bf16.mxu0 0
      %746 = vmatpush1.bf16.msra.mxu0 0
      %747 = vmatprep.subr.bf16.mxu0 0
      %748 = vmatpush1.bf16.msra.mxu0 0
      %749 = vmatprep.subr.bf16.mxu0 0
      %750 = vmatpush1.bf16.msra.mxu0 0
      %751 = vmatprep.subr.bf16.mxu0 0
      %752 = vmatpush1.bf16.msra.mxu0 0
      %753 = vmatprep.subr.bf16.mxu0 0
      %754 = vmatpush1.bf16.msra.mxu0 0
      %755 = vmatprep.subr.bf16.mxu0 0
      %756 = vmatpush1.bf16.msra.mxu0 0
      %757 = vmatprep.subr.bf16.mxu0 0
      %758 = vmatpush1.bf16.msra.mxu0 0
      %759 = vmatprep.mubr.bf16.mxu0 0
      %760 = vmatmul.mubr.bf16.gmra.mrb[0].mxu0 %v725
      %v761 = vpop.f32.mrb[0].mxu0
      %v762 = vadd.f32 0.0, %v761
      %v763 = vpop.f32.mrb[0].mxu0
      %v764 = vpop.f32.mrb[0].mxu0
      %v765 = vpop.f32.mrb[0].mxu0
      %766 = vdwg.mxu0
      %v767 = vadd.f32 %v719, %v762
      %v768 = vtanh.pop %v767
      %v769 = vxor.u32 %v767, 2147483648
      %v770 = vmul.f32 %v769, 1.442695
      %v771 = vpow.pop %v770
      %v772 = vadd.f32 %v771, 1.0
      %v773 = vrcp.pop %v772
      %v774 = vmul.f32 1.0, %v773
      %v775 = vsel %vm608, %v768, %v774
      %v776 = vmul.f32 %v775, %v707
      %778 = vrot.lane.b32.xlu0 %v775, 64
      %v779 = vpop.permute.xlu0 %778
      %v781 = vmul.f32 %v775, %v779
      %783 = vrot.lane.b32.xlu0 %v781, 32
      %v784 = vpop.permute.xlu0 %783
      %v786 = vadd.f32 %v776, %v784
      %v787 = vtanh.pop %v786
      %789 = vrot.lane.b32.xlu0 %v787, 64
      %v790 = vpop.permute.xlu0 %789
      %v792 = vmul.f32 %v775, %v790
      %794 = vrot.lane.b32.xlu0 %v792, 32
      %v795 = vpop.permute.xlu0 %794
      %797 = vst.msk [vmem:[#allocation3 + $0x4] sm:$0x3] %vm638, %v795
      %v798 = vld [vmem:[#allocation2 + $0x6] sm:$0x3]
      %v799 = vpack.c.bf16 %v792, %v792
      %801 = vrot.lane.b32.xlu0 %v799, 32
      %v802 = vpop.permute.xlu0 %801
      %v804 = vsel %vm431, %v802, 0
      %806 = vmatprep.subr.bf16.mxu0 0
      %807 = vmatpush1.bf16.msra.mxu0 %v556
      %808 = vmatprep.subr.bf16.mxu0 0
      %809 = vmatpush1.bf16.msra.mxu0 %v557
      %810 = vmatprep.subr.bf16.mxu0 0
      %811 = vmatpush1.bf16.msra.mxu0 0
      %812 = vmatprep.subr.bf16.mxu0 0
      %813 = vmatpush1.bf16.msra.mxu0 0
      %814 = vmatprep.subr.bf16.mxu0 0
      %815 = vmatpush1.bf16.msra.mxu0 0
      %816 = vmatprep.subr.bf16.mxu0 0
      %817 = vmatpush1.bf16.msra.mxu0 0
      %818 = vmatprep.subr.bf16.mxu0 0
      %819 = vmatpush1.bf16.msra.mxu0 0
      %820 = vmatprep.subr.bf16.mxu0 0
      %821 = vmatpush1.bf16.msra.mxu0 0
      %822 = vmatprep.subr.bf16.mxu0 0
      %823 = vmatpush1.bf16.msra.mxu0 0
      %824 = vmatprep.subr.bf16.mxu0 0
      %825 = vmatpush1.bf16.msra.mxu0 0
      %826 = vmatprep.subr.bf16.mxu0 0
      %827 = vmatpush1.bf16.msra.mxu0 0
      %828 = vmatprep.subr.bf16.mxu0 0
      %829 = vmatpush1.bf16.msra.mxu0 0
      %830 = vmatprep.subr.bf16.mxu0 0
      %831 = vmatpush1.bf16.msra.mxu0 0
      %832 = vmatprep.subr.bf16.mxu0 0
      %833 = vmatpush1.bf16.msra.mxu0 0
      %834 = vmatprep.subr.bf16.mxu0 0
      %835 = vmatpush1.bf16.msra.mxu0 0
      %836 = vmatprep.subr.bf16.mxu0 0
      %837 = vmatpush1.bf16.msra.mxu0 0
      %838 = vmatprep.mubr.bf16.mxu0 0
      %839 = vmatmul.mubr.bf16.gmra.mrb[0].mxu0 %v804
      %v840 = vpop.f32.mrb[0].mxu0
      %v841 = vadd.f32 0.0, %v840
      %v842 = vpop.f32.mrb[0].mxu0
      %v843 = vpop.f32.mrb[0].mxu0
      %v844 = vpop.f32.mrb[0].mxu0
      %845 = vdwg.mxu0
      %v846 = vadd.f32 %v798, %v841
      %v847 = vtanh.pop %v846
      %v848 = vxor.u32 %v846, 2147483648
      %v849 = vmul.f32 %v848, 1.442695
      %v850 = vpow.pop %v849
      %v851 = vadd.f32 %v850, 1.0
      %v852 = vrcp.pop %v851
      %v853 = vmul.f32 1.0, %v852
      %v854 = vsel %vm608, %v847, %v853
      %v855 = vmul.f32 %v854, %v786
      %857 = vrot.lane.b32.xlu0 %v854, 64
      %v858 = vpop.permute.xlu0 %857
      %v860 = vmul.f32 %v854, %v858
      %862 = vrot.lane.b32.xlu0 %v860, 32
      %v863 = vpop.permute.xlu0 %862
      %v865 = vadd.f32 %v855, %v863
      %v866 = vtanh.pop %v865
      %868 = vrot.lane.b32.xlu0 %v866, 64
      %v869 = vpop.permute.xlu0 %868
      %v871 = vmul.f32 %v854, %v869
      %873 = vrot.lane.b32.xlu0 %v871, 32
      %v874 = vpop.permute.xlu0 %873
      %876 = vst.msk [vmem:[#allocation3 + $0x6] sm:$0x3] %vm638, %v874
      %v877 = vld [vmem:[#allocation3] sm:$0xff]
      %v878 = vpack.c.bf16 %v877, %v877
      %v879 = vld [vmem:[%s398] sm:$0xf]
      %v880 = vld [vmem:[%s398 + $0x4] sm:$0xf]
      %v881 = vld [vmem:[%s398 + $0x8] sm:$0xf]
      %v882 = vld [vmem:[%s398 + $0xc] sm:$0xf]
      %v883 = vld [vmem:[%s401] sm:$0x1]
      %v885 = vlaneseq
      %v886 = vshrl.u32 %v885, 7
      %v887 = vsub.s32 0, %v886
      %v888 = vrot.slane %v883, %v887
      %v894 = vunpack.c.l.b16 %v879
      %v895 = vunpack.c.l.b16 %v880
      %v896 = vunpack.c.l.b16 %v881
      %v897 = vunpack.c.l.b16 %v882
      %v898 = vpack.c.b16 %v895, %v894
      %v899 = vpack.c.b16 %v897, %v896
      %v903 = vsel %vm431, %v878, 0
      %905 = vmatprep.subr.bf16.mxu0 0
      %906 = vmatpush1.bf16.msra.mxu0 %v898
      %907 = vmatprep.subr.bf16.mxu0 0
      %908 = vmatpush1.bf16.msra.mxu0 %v899
      %909 = vmatprep.subr.bf16.mxu0 0
      %910 = vmatpush1.bf16.msra.mxu0 0
      %911 = vmatprep.subr.bf16.mxu0 0
      %912 = vmatpush1.bf16.msra.mxu0 0
      %913 = vmatprep.subr.bf16.mxu0 0
      %914 = vmatpush1.bf16.msra.mxu0 0
      %915 = vmatprep.subr.bf16.mxu0 0
      %916 = vmatpush1.bf16.msra.mxu0 0
      %917 = vmatprep.subr.bf16.mxu0 0
      %918 = vmatpush1.bf16.msra.mxu0 0
      %919 = vmatprep.subr.bf16.mxu0 0
      %920 = vmatpush1.bf16.msra.mxu0 0
      %921 = vmatprep.subr.bf16.mxu0 0
      %922 = vmatpush1.bf16.msra.mxu0 0
      %923 = vmatprep.subr.bf16.mxu0 0
      %924 = vmatpush1.bf16.msra.mxu0 0
      %925 = vmatprep.subr.bf16.mxu0 0
      %926 = vmatpush1.bf16.msra.mxu0 0
      %927 = vmatprep.subr.bf16.mxu0 0
      %928 = vmatpush1.bf16.msra.mxu0 0
      %929 = vmatprep.subr.bf16.mxu0 0
      %930 = vmatpush1.bf16.msra.mxu0 0
      %931 = vmatprep.subr.bf16.mxu0 0
      %932 = vmatpush1.bf16.msra.mxu0 0
      %933 = vmatprep.subr.bf16.mxu0 0
      %934 = vmatpush1.bf16.msra.mxu0 0
      %935 = vmatprep.subr.bf16.mxu0 0
      %936 = vmatpush1.bf16.msra.mxu0 0
      %937 = vmatprep.mubr.bf16.mxu0 0
      %938 = vmatmul.mubr.bf16.gmra.mrb[0].mxu0 %v903
      %v939 = vpop.f32.mrb[0].mxu0
      %v940 = vadd.f32 %v888, %v939
      %v941 = vpop.f32.mrb[0].mxu0
      %v942 = vpop.f32.mrb[0].mxu0
      %v943 = vpop.f32.mrb[0].mxu0
      %944 = vdwg.mxu0
      %vm945 = vcmask 523264
      %946 = vst.msk [vmem:[%s405] sm:$0xff] %vm945, %v940
      %p947 = scmp.lt.s32.totalorder %s19, 1
      %s948 = scalar_select %p947, %s19, 1
      %s949 = smul.addr %s948, 8
      %s950 = scalar_lea.vmem %s8, %s949
      // Predicated region
      $region53: #{image_learned_prior_forward.4} parent=51 // pred_check
        %p951 = pneg %p240
      $region54: #{image_learned_prior_forward.4} parent=51 // pred_check_branch
        %953 = sbr.rel (%p951) target = $region56
      $region55: #{image_learned_prior_forward.4} parent=51 // pred_region
        _
      $region56: #{image_learned_prior_forward.4} parent=51 // pred_fallthru
        _
    $region52: #{image_learned_prior_forward.4} parent=5 // pred_fallthru
      _
    %p954 = scmp.le.s32.totalorder 2, %s14
    // Predicated region
    $region57: #{image_learned_prior_forward.4} parent=5 // pred_check
      %p955 = pneg %p954
    $region58: #{image_learned_prior_forward.4} parent=5 // pred_check_branch
      %957 = sbr.rel (%p955) target = $region60
    $region59: #{image_learned_prior_forward.4} parent=5 // pred_region
      %s958 = ssub.s32 %s14, 2
      // Predicated region
      $region61: #{image_learned_prior_forward.4} parent=59 // pred_check
        %p959 = pneg %p246
      $region62: #{image_learned_prior_forward.4} parent=59 // pred_check_branch
        %961 = sbr.rel (%p959) target = $region64
      $region63: #{image_learned_prior_forward.4} parent=59 // pred_region
        %p962 = scmp.lt.s32.totalorder %s20, 1
        %s963 = scalar_select %p962, %s20, 1
        %s964 = smul.addr %s963, 8
        %s965 = scalar_lea.vmem %s8, %s964
      $region64: #{image_learned_prior_forward.4} parent=59 // pred_fallthru
        _
    $region60: #{image_learned_prior_forward.4} parent=5 // pred_fallthru
      _
  $region6: #{image_learned_prior_forward.4} parent=0 // loop_footer
    %s18 = sadd.s32 1, %s14
  $region7: #{image_learned_prior_forward.4} parent=0 // loop_footer_branch
    %13 = sbr.rel target = $region3
  $region8: #{image_learned_prior_forward.4} parent=0 // loop_exit
    _

// kernel: image_learned_prior_forward.3
$region0: #{image_learned_prior_forward.3}
  #allocation0 [shape = 'u32[]', space=smem, size = 0x4, offset = 0x4, fixed_abs, tag = 'smem constant byte address 0x4 - core index']
  #allocation1 [shape = 'u32[144,128]{1,0:T(1,128)}', space=vmem, size = 0x12000, scoped, tag = 'internal scratch']
  %s0 = inlined_call_operand.vmem [shape: bf16[3,8,16,54], index: 0, kind: input, shape index: {}]
  %s1 = inlined_call_operand.vmem [shape: bf16[3,54,512], index: 1, kind: input, shape index: {}]
  %s2 = inlined_call_operand.vmem [shape: f32[1,512], index: 2, kind: input, shape index: {}]
  %s3 = inlined_call_operand.vmem [shape: bf16[512,32], index: 3, kind: input, shape index: {}]
  %s4 = inlined_call_operand.vmem [shape: bf16[8,1,32], index: 4, kind: output, shape index: {}]
  %s5 = sld [smem:[#allocation0]]
  $region90: #{image_learned_prior_forward.3} parent=0
    _
  %s7 = ssub.s32 1, %s5
  %s8 = scalar_select 0, %s7, %s5
  $region1: #{image_learned_prior_forward.3} parent=0
    #allocation2 [shape = 'u8[24576]{0}', space=vmem, size = 0x6000, scoped, tag = 'input window, operand 0']
    loop: start=0, step=1, limit=10
    $region2: #{image_learned_prior_forward.3} parent=1 // loop_pre_header
      _
    $region3: #{image_learned_prior_forward.3} parent=1 // loop_header
      %s10 = sphi 0, %s14
      %p11 = scmp.ge.s32.totalorder %s10, 10
      %s20 = sphi 0, %s22
      %s23 = sphi 0, %s20
      %s24 = sphi 0, %s23
      %s40 = sphi 0, %s24
      %s44 = sphi 0, %s44
      %s46 = sphi 0, %s44
      %s47 = sphi 0, %s46
      %s61 = sphi 0, %s47
      %s65 = sphi 0, %s65
      %s67 = sphi 0, %s65
      %s68 = sphi 0, %s67
      %s82 = sphi 0, %s68
      %s86 = sphi 0, %s86
      %s88 = sphi 0, %s86
      %s89 = sphi 0, %s88
      %s103 = sphi 0, %s89
      %s109 = sphi 0, %s111
      %s112 = sphi 0, %s109
      %s113 = sphi 0, %s112
      %s129 = sphi 0, %s113
    $region4: #{image_learned_prior_forward.3} parent=1 // loop_header_branch
      %13 = sbr.rel (%p11) target = $region8
    $region5: #{image_learned_prior_forward.3} parent=1 // loop_body
      %s15 = ssub.s32 %s10, 1
      %s16 = ssub.s32 %s10, 2
      %s17 = sadd.s32 %s10, 1
      %s18 = ssub.s32 %s10, %s17
      %p19 = scmp.eq.s32.totalorder %s18, 0
      %s21 = sadd.s32 %s20, 1
      %s22 = scalar_select %p19, %s20, %s21
      %p25 = pneg %p19
      %p26 = scmp.eq.s32.totalorder %s10, 7
      %p27 = por %p25, %p26
      %p28 = scmp.ne.s32.totalorder %s20, %s23
      %p29 = scmp.eq.s32.totalorder %s10, 0
      %p30 = por %p28, %p29
      %p31 = scmp.ne.s32.totalorder %s20, %s23
      %p32 = scmp.eq.s32.totalorder %s15, 7
      %p33 = por %p31, %p32
      %p34 = scmp.ne.s32.totalorder %s23, %s24
      %p35 = scmp.eq.s32.totalorder %s15, 0
      %p36 = por %p34, %p35
      %p37 = scmp.ne.s32.totalorder %s23, %s24
      %p38 = scmp.eq.s32.totalorder %s16, 7
      %p39 = por %p37, %p38
      %p41 = scmp.ne.s32.totalorder %s24, %s40
      %p42 = scmp.eq.s32.totalorder %s16, 0
      %p43 = por %p41, %p42
      %s45 = sadd.s32 %s44, 1
      %p48 = scmp.eq.s32.totalorder %s10, 7
      %p49 = scmp.ne.s32.totalorder %s44, %s46
      %p50 = scmp.eq.s32.totalorder %s10, 0
      %p51 = por %p49, %p50
      %p52 = scmp.ne.s32.totalorder %s44, %s46
      %p53 = scmp.eq.s32.totalorder %s15, 7
      %p54 = por %p52, %p53
      %p55 = scmp.ne.s32.totalorder %s46, %s47
      %p56 = scmp.eq.s32.totalorder %s15, 0
      %p57 = por %p55, %p56
      %p58 = scmp.ne.s32.totalorder %s46, %s47
      %p59 = scmp.eq.s32.totalorder %s16, 7
      %p60 = por %p58, %p59
      %p62 = scmp.ne.s32.totalorder %s47, %s61
      %p63 = scmp.eq.s32.totalorder %s16, 0
      %p64 = por %p62, %p63
      %s66 = sadd.s32 %s65, 1
      %p69 = scmp.eq.s32.totalorder %s10, 7
      %p70 = scmp.ne.s32.totalorder %s65, %s67
      %p71 = scmp.eq.s32.totalorder %s10, 0
      %p72 = por %p70, %p71
      %p73 = scmp.ne.s32.totalorder %s65, %s67
      %p74 = scmp.eq.s32.totalorder %s15, 7
      %p75 = por %p73, %p74
      %p76 = scmp.ne.s32.totalorder %s67, %s68
      %p77 = scmp.eq.s32.totalorder %s15, 0
      %p78 = por %p76, %p77
      %p79 = scmp.ne.s32.totalorder %s67, %s68
      %p80 = scmp.eq.s32.totalorder %s16, 7
      %p81 = por %p79, %p80
      %p83 = scmp.ne.s32.totalorder %s68, %s82
      %p84 = scmp.eq.s32.totalorder %s16, 0
      %p85 = por %p83, %p84
      %s87 = sadd.s32 %s86, 1
      %p90 = scmp.eq.s32.totalorder %s10, 7
      %p91 = scmp.ne.s32.totalorder %s86, %s88
      %p92 = scmp.eq.s32.totalorder %s10, 0
      %p93 = por %p91, %p92
      %p94 = scmp.ne.s32.totalorder %s86, %s88
      %p95 = scmp.eq.s32.totalorder %s15, 7
      %p96 = por %p94, %p95
      %p97 = scmp.ne.s32.totalorder %s88, %s89
      %p98 = scmp.eq.s32.totalorder %s15, 0
      %p99 = por %p97, %p98
      %p100 = scmp.ne.s32.totalorder %s88, %s89
      %p101 = scmp.eq.s32.totalorder %s16, 7
      %p102 = por %p100, %p101
      %p104 = scmp.ne.s32.totalorder %s89, %s103
      %p105 = scmp.eq.s32.totalorder %s16, 0
      %p106 = por %p104, %p105
      %s107 = ssub.s32 %s10, %s17
      %p108 = scmp.eq.s32.totalorder %s107, 0
      %s110 = sadd.s32 %s109, 1
      %s111 = scalar_select %p108, %s109, %s110
      %p114 = pneg %p108
      %p115 = scmp.eq.s32.totalorder %s10, 7
      %p116 = por %p114, %p115
      %p117 = scmp.ne.s32.totalorder %s109, %s112
      %p118 = scmp.eq.s32.totalorder %s10, 0
      %p119 = por %p117, %p118
      %p120 = scmp.ne.s32.totalorder %s109, %s112
      %p121 = scmp.eq.s32.totalorder %s15, 7
      %p122 = por %p120, %p121
      %p123 = scmp.ne.s32.totalorder %s112, %s113
      %p124 = scmp.eq.s32.totalorder %s15, 0
      %p125 = por %p123, %p124
      %p126 = scmp.ne.s32.totalorder %s112, %s113
      %p127 = scmp.eq.s32.totalorder %s16, 7
      %p128 = por %p126, %p127
      %p130 = scmp.ne.s32.totalorder %s113, %s129
      %p131 = scmp.eq.s32.totalorder %s16, 0
      %p132 = por %p130, %p131
      %p133 = scmp.le.s32.totalorder 1, %s10
      %p134 = scmp.lt.s32.totalorder %s10, 9
      %p135 = pnand %p133, %p134
      %p136 = pneg %p135
      // Predicated region
      $region9: #{image_learned_prior_forward.3} parent=5 // pred_check
        _
      $region10: #{image_learned_prior_forward.3} parent=5 // pred_check_branch
        %138 = sbr.rel (%p135) target = $region12
      $region11: #{image_learned_prior_forward.3} parent=5 // pred_region
        %s139 = ssub.s32 %s10, 1
        // Predicated region
        $region13: #{image_learned_prior_forward.3} parent=11 // pred_check
          %p140 = pneg %p57
        $region14: #{image_learned_prior_forward.3} parent=11 // pred_check_branch
          %142 = sbr.rel (%p140) target = $region16
        $region15: #{image_learned_prior_forward.3} parent=11 // pred_region
          _
        $region16: #{image_learned_prior_forward.3} parent=11 // pred_fallthru
          _
        // Predicated region
        $region17: #{image_learned_prior_forward.3} parent=11 // pred_check
          %p143 = pneg %p78
        $region18: #{image_learned_prior_forward.3} parent=11 // pred_check_branch
          %145 = sbr.rel (%p143) target = $region20
        $region19: #{image_learned_prior_forward.3} parent=11 // pred_region
          _
        $region20: #{image_learned_prior_forward.3} parent=11 // pred_fallthru
          _
        // Predicated region
        $region21: #{image_learned_prior_forward.3} parent=11 // pred_check
          %p146 = pneg %p99
        $region22: #{image_learned_prior_forward.3} parent=11 // pred_check_branch
          %148 = sbr.rel (%p146) target = $region24
        $region23: #{image_learned_prior_forward.3} parent=11 // pred_region
          _
        $region24: #{image_learned_prior_forward.3} parent=11 // pred_fallthru
          _
      $region12: #{image_learned_prior_forward.3} parent=5 // pred_fallthru
        _
      %p149 = scmp.lt.s32.totalorder %s10, 8
      // Predicated region
      $region25: #{image_learned_prior_forward.3} parent=5 // pred_check
        %p150 = pneg %p149
      $region26: #{image_learned_prior_forward.3} parent=5 // pred_check_branch
        %152 = sbr.rel (%p150) target = $region28
      $region27: #{image_learned_prior_forward.3} parent=5 // pred_region
        // Predicated region
        $region29: #{image_learned_prior_forward.3} parent=27 // pred_check
          %p153 = pneg %p30
        $region30: #{image_learned_prior_forward.3} parent=27 // pred_check_branch
          %155 = sbr.rel (%p153) target = $region32
        $region31: #{image_learned_prior_forward.3} parent=27 // pred_region
          %s156 = sand.u32 %s20, 1
          %s157 = sand.u32 %s20, 1
          %s158 = smul.addr %s157, 24
          %s159 = scalar_lea.vmem [#allocation2], %s158
          %s160 = smul.addr %s10, 2
          %s161 = smul.addr %s160, 4
          %s162 = scalar_lea.vmem %s0, %s161
          // Predicated region
          $region33: #{image_learned_prior_forward.3} parent=31 // pred_check
            _
          $region34: #{image_learned_prior_forward.3} parent=31 // pred_check_branch
            %164 = sbr.rel (0) target = $region36
          $region35: #{image_learned_prior_forward.3} parent=31 // pred_region
            // Predicated region
            $region37: #{image_learned_prior_forward.3} parent=35 // pred_check
              _
            $region38: #{image_learned_prior_forward.3} parent=35 // pred_check_branch
              %166 = sbr.rel target = $region40
            $region39: #{image_learned_prior_forward.3} parent=35 // pred_region
              // Predicated region
              $region52: #{image_learned_prior_forward.3} parent=39 // pred_check
                _
              $region53: #{image_learned_prior_forward.3} parent=39 // pred_check_branch
                %191 = sbr.rel (0) target = $region55
              $region54: #{image_learned_prior_forward.3} parent=39 // pred_region
                loop: start=0, step=1, limit=1
                $region56: #{image_learned_prior_forward.3} parent=54 // loop_pre_header
                  _
                $region57: #{image_learned_prior_forward.3} parent=54 // loop_header
                  %s193 = sphi 0, %s197
                  %p194 = scmp.ge.s32.totalorder %s193, 1
                  %s198 = sphi %s162, %s162
                  %s199 = sphi %s159, %s159
                $region58: #{image_learned_prior_forward.3} parent=54 // loop_header_branch
                  %196 = sbr.rel (%p194) target = $region62
                $region59: #{image_learned_prior_forward.3} parent=54 // loop_body
                  _
                $region60: #{image_learned_prior_forward.3} parent=54 // loop_footer
                  %s197 = sadd.s32 1, %s193
                $region61: #{image_learned_prior_forward.3} parent=54 // loop_footer_branch
                  %192 = sbr.rel target = $region57
                $region62: #{image_learned_prior_forward.3} parent=54 // loop_exit
                  _
                loop: start=0, step=1, limit=1
                $region63: #{image_learned_prior_forward.3} parent=54 // loop_pre_header
                  _
                $region64: #{image_learned_prior_forward.3} parent=54 // loop_header
                  %s202 = sphi 0, %s206
                  %p203 = scmp.ge.s32.totalorder %s202, 1
                  %s207 = sphi %s162, %s162
                  %s208 = sphi %s159, %s159
                $region65: #{image_learned_prior_forward.3} parent=54 // loop_header_branch
                  %205 = sbr.rel (%p203) target = $region69
                $region66: #{image_learned_prior_forward.3} parent=54 // loop_body
                  %v209 = vld [vmem:[%s207] sm:$0xf]
                  %210 = vst [vmem:[%s208] sm:$0xf] %v209
                  %v211 = vld [vmem:[%s207 + $0x4] sm:$0xf]
                  %212 = vst [vmem:[%s208 + $0x4] sm:$0xf] %v211
                  %v213 = vld [vmem:[%s207 + $0x40] sm:$0xf]
                  %214 = vst [vmem:[%s208 + $0x8] sm:$0xf] %v213
                  %v215 = vld [vmem:[%s207 + $0x44] sm:$0xf]
                  %216 = vst [vmem:[%s208 + $0xc] sm:$0xf] %v215
                  %v217 = vld [vmem:[%s207 + $0x80] sm:$0xf]
                  %218 = vst [vmem:[%s208 + $0x10] sm:$0xf] %v217
                  %v219 = vld [vmem:[%s207 + $0x84] sm:$0xf]
                  %220 = vst [vmem:[%s208 + $0x14] sm:$0xf] %v219
                $region67: #{image_learned_prior_forward.3} parent=54 // loop_footer
                  %s206 = sadd.s32 1, %s202
                $region68: #{image_learned_prior_forward.3} parent=54 // loop_footer_branch
                  %201 = sbr.rel target = $region64
                $region69: #{image_learned_prior_forward.3} parent=54 // loop_exit
                  _
              $region55: #{image_learned_prior_forward.3} parent=39 // pred_fallthru
                _
            $region40: #{image_learned_prior_forward.3} parent=35 // pred_fallthru
              _
            // Predicated region
            $region41: #{image_learned_prior_forward.3} parent=35 // pred_check
              _
            $region42: #{image_learned_prior_forward.3} parent=35 // pred_check_branch
              %168 = sbr.rel (0) target = $region44
            $region43: #{image_learned_prior_forward.3} parent=35 // pred_region
              loop: start=0, step=1, limit=1
              $region45: #{image_learned_prior_forward.3} parent=43 // loop_pre_header
                _
              $region46: #{image_learned_prior_forward.3} parent=43 // loop_header
                %s171 = sphi 0, %s175
                %p172 = scmp.ge.s32.totalorder %s171, 1
                %s176 = sphi %s162, %s162
                %s177 = sphi %s159, %s159
              $region47: #{image_learned_prior_forward.3} parent=43 // loop_header_branch
                %174 = sbr.rel (%p172) target = $region51
              $region48: #{image_learned_prior_forward.3} parent=43 // loop_body
                %v178 = vld [vmem:[%s176] sm:$0xf]
                %179 = vst [vmem:[%s177] sm:$0xf] %v178
                %v180 = vld [vmem:[%s176 + $0x4] sm:$0xf]
                %181 = vst [vmem:[%s177 + $0x4] sm:$0xf] %v180
                %v182 = vld [vmem:[%s176 + $0x40] sm:$0xf]
                %183 = vst [vmem:[%s177 + $0x8] sm:$0xf] %v182
                %v184 = vld [vmem:[%s176 + $0x44] sm:$0xf]
                %185 = vst [vmem:[%s177 + $0xc] sm:$0xf] %v184
                %v186 = vld [vmem:[%s176 + $0x80] sm:$0xf]
                %187 = vst [vmem:[%s177 + $0x10] sm:$0xf] %v186
                %v188 = vld [vmem:[%s176 + $0x84] sm:$0xf]
                %189 = vst [vmem:[%s177 + $0x14] sm:$0xf] %v188
              $region49: #{image_learned_prior_forward.3} parent=43 // loop_footer
                %s175 = sadd.s32 1, %s171
              $region50: #{image_learned_prior_forward.3} parent=43 // loop_footer_branch
                %170 = sbr.rel target = $region46
              $region51: #{image_learned_prior_forward.3} parent=43 // loop_exit
                _
            $region44: #{image_learned_prior_forward.3} parent=35 // pred_fallthru
              _
          $region36: #{image_learned_prior_forward.3} parent=31 // pred_fallthru
            _
          %221 = vnop
        $region32: #{image_learned_prior_forward.3} parent=27 // pred_fallthru
          _
      $region28: #{image_learned_prior_forward.3} parent=5 // pred_fallthru
        _
      %p222 = scmp.le.s32.totalorder 1, %s10
      %p223 = scmp.lt.s32.totalorder %s10, 9
      %p224 = pnand %p222, %p223
      %p225 = pneg %p224
      // Predicated region
      $region70: #{image_learned_prior_forward.3} parent=5 // pred_check
        _
      $region71: #{image_learned_prior_forward.3} parent=5 // pred_check_branch
        %227 = sbr.rel (%p224) target = $region73
      $region72: #{image_learned_prior_forward.3} parent=5 // pred_region
        %s228 = ssub.s32 %s10, 1
        %s229 = sand.u32 %s23, 1
        %s230 = sand.u32 %s23, 1
        %s231 = smul.addr %s230, 24
        %s232 = scalar_lea.vmem [#allocation2], %s231
        // Predicated region
        $region74: #{image_learned_prior_forward.3} parent=72 // pred_check
          %p233 = pneg %p36
        $region75: #{image_learned_prior_forward.3} parent=72 // pred_check_branch
          %235 = sbr.rel (%p233) target = $region77
        $region76: #{image_learned_prior_forward.3} parent=72 // pred_region
          _
        $region77: #{image_learned_prior_forward.3} parent=72 // pred_fallthru
          _
        %s236 = sand.u32 %s23, 1
        %s237 = sand.u32 %s23, 1
        %s238 = smul.addr %s237, 24
        %s239 = scalar_lea.vmem [#allocation2], %s238
        %p240 = pneg %p36
        %p241 = pneg %p33
        %p242 = pneg %p57
        %p243 = pneg %p54
        %p244 = pneg %p78
        %p245 = pneg %p75
        %p246 = pneg %p99
        %p247 = pneg %p96
        %p248 = pneg %p125
        %p249 = pneg %p122
        %p250 = scmp.lt.s32.totalorder %s15, 7
        %s251 = scalar_select %p250, %s15, 7
        %s252 = scalar_lea.vmem %s4, %s251
        %p253 = scmp.lt.s32.totalorder %s15, 7
        %s254 = scalar_select %p253, %s15, 7
        %s255 = scalar_lea.vmem %s4, %s254
        %v257 = vld [vmem:[%s232] sm:$0xf]
        %v258 = vld [vmem:[%s232 + $0x4] sm:$0xf]
        %v259 = vld [vmem:[%s1] sm:$0xff]
        %v260 = vld [vmem:[%s1 + $0x8] sm:$0xff]
        %v261 = vld [vmem:[%s1 + $0x10] sm:$0xff]
        %v262 = vld [vmem:[%s1 + $0x18] sm:$0xff]
        %v263 = vld [vmem:[%s1 + $0x20] sm:$0xff]
        %v264 = vld [vmem:[%s1 + $0x28] sm:$0xff]
        %v265 = vld [vmem:[%s1 + $0x30] sm:$0xff]
        %v266 = vld [vmem:[%s1 + $0x38] sm:$0xff]
        %v267 = vld [vmem:[%s1 + $0x40] sm:$0xff]
        %v268 = vld [vmem:[%s1 + $0x48] sm:$0xff]
        %v269 = vld [vmem:[%s1 + $0x50] sm:$0xff]
        %v270 = vld [vmem:[%s1 + $0x58] sm:$0xff]
        %v271 = vld [vmem:[%s1 + $0x60] sm:$0x77]
        %v272 = vld [vmem:[%s1 + $0x68] sm:$0x77]
        %s273 = scalar_lea.vmem %s232, 8 [#allocation2]
        %v274 = vld [vmem:[%s273] sm:$0xf]
        %v275 = vld [vmem:[%s273 + $0x4] sm:$0xf]
        %s276 = scalar_lea.vmem %s1, 112
        %v277 = vld [vmem:[%s276] sm:$0xff]
        %v278 = vld [vmem:[%s276 + $0x8] sm:$0xff]
        %v279 = vld [vmem:[%s276 + $0x10] sm:$0xff]
        %v280 = vld [vmem:[%s276 + $0x18] sm:$0xff]
        %v281 = vld [vmem:[%s276 + $0x20] sm:$0xff]
        %v282 = vld [vmem:[%s276 + $0x28] sm:$0xff]
        %v283 = vld [vmem:[%s276 + $0x30] sm:$0xff]
        %v284 = vld [vmem:[%s276 + $0x38] sm:$0xff]
        %v285 = vld [vmem:[%s276 + $0x40] sm:$0xff]
        %v286 = vld [vmem:[%s276 + $0x48] sm:$0xff]
        %v287 = vld [vmem:[%s276 + $0x50] sm:$0xff]
        %v288 = vld [vmem:[%s276 + $0x58] sm:$0xff]
        %v289 = vld [vmem:[%s276 + $0x60] sm:$0x77]
        %v290 = vld [vmem:[%s276 + $0x68] sm:$0x77]
        %v293 = vunpack.c.l.b16 %v274
        %v294 = vunpack.c.l.b16 %v275
        %v295 = vpack.c.b16 %v294, %v293
        %v310 = vunpack.c.l.b16 %v277
        %v311 = vunpack.c.h.b16 %v277
        %v312 = vunpack.c.l.b16 %v278
        %v313 = vunpack.c.h.b16 %v278
        %v314 = vunpack.c.l.b16 %v279
        %v315 = vunpack.c.h.b16 %v279
        %v316 = vunpack.c.l.b16 %v280
        %v317 = vunpack.c.h.b16 %v280
        %v318 = vunpack.c.l.b16 %v281
        %v319 = vunpack.c.h.b16 %v281
        %v320 = vunpack.c.l.b16 %v282
        %v321 = vunpack.c.h.b16 %v282
        %v322 = vunpack.c.l.b16 %v283
        %v323 = vunpack.c.h.b16 %v283
        %v324 = vunpack.c.l.b16 %v284
        %v325 = vunpack.c.h.b16 %v284
        %v326 = vunpack.c.l.b16 %v285
        %v327 = vunpack.c.h.b16 %v285
        %v328 = vunpack.c.l.b16 %v286
        %v329 = vunpack.c.h.b16 %v286
        %v330 = vunpack.c.l.b16 %v287
        %v331 = vunpack.c.h.b16 %v287
        %v332 = vunpack.c.l.b16 %v288
        %v333 = vunpack.c.h.b16 %v288
        %v334 = vunpack.c.l.b16 %v289
        %v335 = vunpack.c.h.b16 %v289
        %v336 = vunpack.c.l.b16 %v290
        %v337 = vunpack.c.h.b16 %v290
        %v338 = vpack.c.b16 %v314, %v310
        %v339 = vpack.c.b16 %v315, %v311
        %v340 = vpack.c.b16 %v316, %v312
        %v341 = vpack.c.b16 %v317, %v313
        %v342 = vpack.c.b16 %v322, %v318
        %v343 = vpack.c.b16 %v323, %v319
        %v344 = vpack.c.b16 %v324, %v320
        %v345 = vpack.c.b16 %v325, %v321
        %v346 = vpack.c.b16 %v330, %v326
        %v347 = vpack.c.b16 %v331, %v327
        %v348 = vpack.c.b16 %v332, %v328
        %v349 = vpack.c.b16 %v333, %v329
        %v350 = vpack.c.b16 %v334, %v334
        %v351 = vpack.c.b16 %v335, %v335
        %v352 = vpack.c.b16 %v336, %v336
        %v353 = vpack.c.b16 %v337, %v337
        %vm366 = vcmask 441344
        %v368 = vsel %vm366, %v295, 0
        %vm370 = vcmask 1042432
        %v372 = vsel %vm370, %v350, 0
        %v375 = vsel %vm370, %v351, 0
        %v378 = vsel %vm370, %v352, 0
        %v381 = vsel %vm370, %v353, 0
        %383 = vmatprep.subr.bf16.mxu0 %v339
        %384 = vmatpush1.bf16.msra.mxu0 %v338
        %385 = vmatprep.subr.bf16.mxu0 %v343
        %386 = vmatpush1.bf16.msra.mxu0 %v342
        %387 = vmatprep.subr.bf16.mxu0 %v347
        %388 = vmatpush1.bf16.msra.mxu0 %v346
        %389 = vmatprep.subr.bf16.mxu0 %v375
        %390 = vmatpush1.bf16.msra.mxu0 %v372
        %391 = vmatprep.subr.bf16.mxu0 0
        %392 = vmatpush1.bf16.msra.mxu0 0
        %393 = vmatprep.subr.bf16.mxu0 0
        %394 = vmatpush1.bf16.msra.mxu0 0
        %395 = vmatprep.subr.bf16.mxu0 0
        %396 = vmatpush1.bf16.msra.mxu0 0
        %397 = vmatprep.subr.bf16.mxu0 0
        %398 = vmatpush1.bf16.msra.mxu0 0
        %399 = vmatprep.subr.bf16.mxu0 0
        %400 = vmatpush1.bf16.msra.mxu0 0
        %401 = vmatprep.subr.bf16.mxu0 0
        %402 = vmatpush1.bf16.msra.mxu0 0
        %403 = vmatprep.subr.bf16.mxu0 0
        %404 = vmatpush1.bf16.msra.mxu0 0
        %405 = vmatprep.subr.bf16.mxu0 0
        %406 = vmatpush1.bf16.msra.mxu0 0
        %407 = vmatprep.subr.bf16.mxu0 0
        %408 = vmatpush1.bf16.msra.mxu0 0
        %409 = vmatprep.subr.bf16.mxu0 0
        %410 = vmatpush1.bf16.msra.mxu0 0
        %411 = vmatprep.subr.bf16.mxu0 0
        %412 = vmatpush1.bf16.msra.mxu0 0
        %413 = vmatprep.subr.bf16.mxu0 0
        %414 = vmatpush1.bf16.msra.mxu0 0
        %415 = vmatprep.mubr.bf16.mxu0 0
        %416 = vmatmul.mubr.bf16.gmra.mrb[0].mxu0 %v368
        %v417 = vpop.f32.mrb[0].mxu0
        %v418 = vadd.f32 0.0, %v417
        %v419 = vpop.f32.mrb[0].mxu0
        %v420 = vadd.f32 0.0, %v419
        %v421 = vpop.f32.mrb[0].mxu0
        %v422 = vadd.f32 0.0, %v421
        %v423 = vpop.f32.mrb[0].mxu0
        %v424 = vadd.f32 0.0, %v423
        %425 = vdwg.mxu0
        %426 = vmatprep.subr.bf16.mxu0 %v341
        %427 = vmatpush1.bf16.msra.mxu0 %v340
        %428 = vmatprep.subr.bf16.mxu0 %v345
        %429 = vmatpush1.bf16.msra.mxu0 %v344
        %430 = vmatprep.subr.bf16.mxu0 %v349
        %431 = vmatpush1.bf16.msra.mxu0 %v348
        %432 = vmatprep.subr.bf16.mxu0 %v381
        %433 = vmatpush1.bf16.msra.mxu0 %v378
        %434 = vmatprep.subr.bf16.mxu0 0
        %435 = vmatpush1.bf16.msra.mxu0 0
        %436 = vmatprep.subr.bf16.mxu0 0
        %437 = vmatpush1.bf16.msra.mxu0 0
        %438 = vmatprep.subr.bf16.mxu0 0
        %439 = vmatpush1.bf16.msra.mxu0 0
        %440 = vmatprep.subr.bf16.mxu0 0
        %441 = vmatpush1.bf16.msra.mxu0 0
        %442 = vmatprep.subr.bf16.mxu0 0
        %443 = vmatpush1.bf16.msra.mxu0 0
        %444 = vmatprep.subr.bf16.mxu0 0
        %445 = vmatpush1.bf16.msra.mxu0 0
        %446 = vmatprep.subr.bf16.mxu0 0
        %447 = vmatpush1.bf16.msra.mxu0 0
        %448 = vmatprep.subr.bf16.mxu0 0
        %449 = vmatpush1.bf16.msra.mxu0 0
        %450 = vmatprep.subr.bf16.mxu0 0
        %451 = vmatpush1.bf16.msra.mxu0 0
        %452 = vmatprep.subr.bf16.mxu0 0
        %453 = vmatpush1.bf16.msra.mxu0 0
        %454 = vmatprep.subr.bf16.mxu0 0
        %455 = vmatpush1.bf16.msra.mxu0 0
        %456 = vmatprep.subr.bf16.mxu0 0
        %457 = vmatpush1.bf16.msra.mxu0 0
        %458 = vmatprep.mubr.bf16.mxu0 0
        %459 = vmatmul.mubr.bf16.gmra.mrb[0].mxu0 %v368
        %v460 = vpop.f32.mrb[0].mxu0
        %v461 = vadd.f32 0.0, %v460
        %v462 = vpop.f32.mrb[0].mxu0
        %v463 = vadd.f32 0.0, %v462
        %v464 = vpop.f32.mrb[0].mxu0
        %v465 = vadd.f32 0.0, %v464
        %v466 = vpop.f32.mrb[0].mxu0
        %v467 = vadd.f32 0.0, %v466
        %468 = vdwg.mxu0
        %v471 = vunpack.c.l.b16 %v257
        %v472 = vunpack.c.l.b16 %v258
        %v473 = vpack.c.b16 %v472, %v471
        %v488 = vunpack.c.l.b16 %v259
        %v489 = vunpack.c.h.b16 %v259
        %v490 = vunpack.c.l.b16 %v260
        %v491 = vunpack.c.h.b16 %v260
        %v492 = vunpack.c.l.b16 %v261
        %v493 = vunpack.c.h.b16 %v261
        %v494 = vunpack.c.l.b16 %v262
        %v495 = vunpack.c.h.b16 %v262
        %v496 = vunpack.c.l.b16 %v263
        %v497 = vunpack.c.h.b16 %v263
        %v498 = vunpack.c.l.b16 %v264
        %v499 = vunpack.c.h.b16 %v264
        %v500 = vunpack.c.l.b16 %v265
        %v501 = vunpack.c.h.b16 %v265
        %v502 = vunpack.c.l.b16 %v266
        %v503 = vunpack.c.h.b16 %v266
        %v504 = vunpack.c.l.b16 %v267
        %v505 = vunpack.c.h.b16 %v267
        %v506 = vunpack.c.l.b16 %v268
        %v507 = vunpack.c.h.b16 %v268
        %v508 = vunpack.c.l.b16 %v269
        %v509 = vunpack.c.h.b16 %v269
        %v510 = vunpack.c.l.b16 %v270
        %v511 = vunpack.c.h.b16 %v270
        %v512 = vunpack.c.l.b16 %v271
        %v513 = vunpack.c.h.b16 %v271
        %v514 = vunpack.c.l.b16 %v272
        %v515 = vunpack.c.h.b16 %v272
        %v516 = vpack.c.b16 %v492, %v488
        %v517 = vpack.c.b16 %v493, %v489
        %v518 = vpack.c.b16 %v494, %v490
        %v519 = vpack.c.b16 %v495, %v491
        %v520 = vpack.c.b16 %v500, %v496
        %v521 = vpack.c.b16 %v501, %v497
        %v522 = vpack.c.b16 %v502, %v498
        %v523 = vpack.c.b16 %v503, %v499
        %v524 = vpack.c.b16 %v508, %v504
        %v525 = vpack.c.b16 %v509, %v505
        %v526 = vpack.c.b16 %v510, %v506
        %v527 = vpack.c.b16 %v511, %v507
        %v528 = vpack.c.b16 %v512, %v512
        %v529 = vpack.c.b16 %v513, %v513
        %v530 = vpack.c.b16 %v514, %v514
        %v531 = vpack.c.b16 %v515, %v515
        %v545 = vsel %vm366, %v473, 0
        %v548 = vsel %vm370, %v528, 0
        %v551 = vsel %vm370, %v529, 0
        %v554 = vsel %vm370, %v530, 0
        %v557 = vsel %vm370, %v531, 0
        %559 = vmatprep.subr.bf16.mxu0 %v517
        %560 = vmatpush1.bf16.msra.mxu0 %v516
        %561 = vmatprep.subr.bf16.mxu0 %v521
        %562 = vmatpush1.bf16.msra.mxu0 %v520
        %563 = vmatprep.subr.bf16.mxu0 %v525
        %564 = vmatpush1.bf16.msra.mxu0 %v524
        %565 = vmatprep.subr.bf16.mxu0 %v551
        %566 = vmatpush1.bf16.msra.mxu0 %v548
        %567 = vmatprep.subr.bf16.mxu0 0
        %568 = vmatpush1.bf16.msra.mxu0 0
        %569 = vmatprep.subr.bf16.mxu0 0
        %570 = vmatpush1.bf16.msra.mxu0 0
        %571 = vmatprep.subr.bf16.mxu0 0
        %572 = vmatpush1.bf16.msra.mxu0 0
        %573 = vmatprep.subr.bf16.mxu0 0
        %574 = vmatpush1.bf16.msra.mxu0 0
        %575 = vmatprep.subr.bf16.mxu0 0
        %576 = vmatpush1.bf16.msra.mxu0 0
        %577 = vmatprep.subr.bf16.mxu0 0
        %578 = vmatpush1.bf16.msra.mxu0 0
        %579 = vmatprep.subr.bf16.mxu0 0
        %580 = vmatpush1.bf16.msra.mxu0 0
        %581 = vmatprep.subr.bf16.mxu0 0
        %582 = vmatpush1.bf16.msra.mxu0 0
        %583 = vmatprep.subr.bf16.mxu0 0
        %584 = vmatpush1.bf16.msra.mxu0 0
        %585 = vmatprep.subr.bf16.mxu0 0
        %586 = vmatpush1.bf16.msra.mxu0 0
        %587 = vmatprep.subr.bf16.mxu0 0
        %588 = vmatpush1.bf16.msra.mxu0 0
        %589 = vmatprep.subr.bf16.mxu0 0
        %590 = vmatpush1.bf16.msra.mxu0 0
        %591 = vmatprep.mubr.bf16.mxu0 0
        %592 = vmatmul.mubr.bf16.gmra.mrb[0].mxu0 %v545
        %v593 = vpop.f32.mrb[0].mxu0
        %v594 = vadd.f32 %v418, %v593
        %v595 = vpop.f32.mrb[0].mxu0
        %v596 = vadd.f32 %v420, %v595
        %v597 = vpop.f32.mrb[0].mxu0
        %v598 = vadd.f32 %v422, %v597
        %v599 = vpop.f32.mrb[0].mxu0
        %v600 = vadd.f32 %v424, %v599
        %601 = vdwg.mxu0
        %602 = vmatprep.subr.bf16.mxu0 %v519
        %603 = vmatpush1.bf16.msra.mxu0 %v518
        %604 = vmatprep.subr.bf16.mxu0 %v523
        %605 = vmatpush1.bf16.msra.mxu0 %v522
        %606 = vmatprep.subr.bf16.mxu0 %v527
        %607 = vmatpush1.bf16.msra.mxu0 %v526
        %608 = vmatprep.subr.bf16.mxu0 %v557
        %609 = vmatpush1.bf16.msra.mxu0 %v554
        %610 = vmatprep.subr.bf16.mxu0 0
        %611 = vmatpush1.bf16.msra.mxu0 0
        %612 = vmatprep.subr.bf16.mxu0 0
        %613 = vmatpush1.bf16.msra.mxu0 0
        %614 = vmatprep.subr.bf16.mxu0 0
        %615 = vmatpush1.bf16.msra.mxu0 0
        %616 = vmatprep.subr.bf16.mxu0 0
        %617 = vmatpush1.bf16.msra.mxu0 0
        %618 = vmatprep.subr.bf16.mxu0 0
        %619 = vmatpush1.bf16.msra.mxu0 0
        %620 = vmatprep.subr.bf16.mxu0 0
        %621 = vmatpush1.bf16.msra.mxu0 0
        %622 = vmatprep.subr.bf16.mxu0 0
        %623 = vmatpush1.bf16.msra.mxu0 0
        %624 = vmatprep.subr.bf16.mxu0 0
        %625 = vmatpush1.bf16.msra.mxu0 0
        %626 = vmatprep.subr.bf16.mxu0 0
        %627 = vmatpush1.bf16.msra.mxu0 0
        %628 = vmatprep.subr.bf16.mxu0 0
        %629 = vmatpush1.bf16.msra.mxu0 0
        %630 = vmatprep.subr.bf16.mxu0 0
        %631 = vmatpush1.bf16.msra.mxu0 0
        %632 = vmatprep.subr.bf16.mxu0 0
        %633 = vmatpush1.bf16.msra.mxu0 0
        %634 = vmatprep.mubr.bf16.mxu0 0
        %635 = vmatmul.mubr.bf16.gmra.mrb[0].mxu0 %v545
        %v636 = vpop.f32.mrb[0].mxu0
        %v637 = vadd.f32 %v461, %v636
        %v638 = vpop.f32.mrb[0].mxu0
        %v639 = vadd.f32 %v463, %v638
        %v640 = vpop.f32.mrb[0].mxu0
        %v641 = vadd.f32 %v465, %v640
        %v642 = vpop.f32.mrb[0].mxu0
        %v643 = vadd.f32 %v467, %v642
        %644 = vdwg.mxu0
        %s645 = scalar_lea.vmem %s232, 16 [#allocation2]
        %v646 = vld [vmem:[%s645] sm:$0xf]
        %v647 = vld [vmem:[%s645 + $0x4] sm:$0xf]
        %s648 = scalar_lea.vmem %s1, 224
        %v649 = vld [vmem:[%s648] sm:$0xff]
        %v650 = vld [vmem:[%s648 + $0x8] sm:$0xff]
        %v651 = vld [vmem:[%s648 + $0x10] sm:$0xff]
        %v652 = vld [vmem:[%s648 + $0x18] sm:$0xff]
        %v653 = vld [vmem:[%s648 + $0x20] sm:$0xff]
        %v654 = vld [vmem:[%s648 + $0x28] sm:$0xff]
        %v655 = vld [vmem:[%s648 + $0x30] sm:$0xff]
        %v656 = vld [vmem:[%s648 + $0x38] sm:$0xff]
        %v657 = vld [vmem:[%s648 + $0x40] sm:$0xff]
        %v658 = vld [vmem:[%s648 + $0x48] sm:$0xff]
        %v659 = vld [vmem:[%s648 + $0x50] sm:$0xff]
        %v660 = vld [vmem:[%s648 + $0x58] sm:$0xff]
        %v661 = vld [vmem:[%s648 + $0x60] sm:$0x77]
        %v662 = vld [vmem:[%s648 + $0x68] sm:$0x77]
        %v665 = vunpack.c.l.b16 %v646
        %v666 = vunpack.c.l.b16 %v647
        %v667 = vpack.c.b16 %v666, %v665
        %v682 = vunpack.c.l.b16 %v649
        %v683 = vunpack.c.h.b16 %v649
        %v684 = vunpack.c.l.b16 %v650
        %v685 = vunpack.c.h.b16 %v650
        %v686 = vunpack.c.l.b16 %v651
        %v687 = vunpack.c.h.b16 %v651
        %v688 = vunpack.c.l.b16 %v652
        %v689 = vunpack.c.h.b16 %v652
        %v690 = vunpack.c.l.b16 %v653
        %v691 = vunpack.c.h.b16 %v653
        %v692 = vunpack.c.l.b16 %v654
        %v693 = vunpack.c.h.b16 %v654
        %v694 = vunpack.c.l.b16 %v655
        %v695 = vunpack.c.h.b16 %v655
        %v696 = vunpack.c.l.b16 %v656
        %v697 = vunpack.c.h.b16 %v656
        %v698 = vunpack.c.l.b16 %v657
        %v699 = vunpack.c.h.b16 %v657
        %v700 = vunpack.c.l.b16 %v658
        %v701 = vunpack.c.h.b16 %v658
        %v702 = vunpack.c.l.b16 %v659
        %v703 = vunpack.c.h.b16 %v659
        %v704 = vunpack.c.l.b16 %v660
        %v705 = vunpack.c.h.b16 %v660
        %v706 = vunpack.c.l.b16 %v661
        %v707 = vunpack.c.h.b16 %v661
        %v708 = vunpack.c.l.b16 %v662
        %v709 = vunpack.c.h.b16 %v662
        %v710 = vpack.c.b16 %v686, %v682
        %v711 = vpack.c.b16 %v687, %v683
        %v712 = vpack.c.b16 %v688, %v684
        %v713 = vpack.c.b16 %v689, %v685
        %v714 = vpack.c.b16 %v694, %v690
        %v715 = vpack.c.b16 %v695, %v691
        %v716 = vpack.c.b16 %v696, %v692
        %v717 = vpack.c.b16 %v697, %v693
        %v718 = vpack.c.b16 %v702, %v698
        %v719 = vpack.c.b16 %v703, %v699
        %v720 = vpack.c.b16 %v704, %v700
        %v721 = vpack.c.b16 %v705, %v701
        %v722 = vpack.c.b16 %v706, %v706
        %v723 = vpack.c.b16 %v707, %v707
        %v724 = vpack.c.b16 %v708, %v708
        %v725 = vpack.c.b16 %v709, %v709
        %v739 = vsel %vm366, %v667, 0
        %v742 = vsel %vm370, %v722, 0
        %v745 = vsel %vm370, %v723, 0
        %v748 = vsel %vm370, %v724, 0
        %v751 = vsel %vm370, %v725, 0
        %753 = vmatprep.subr.bf16.mxu0 %v711
        %754 = vmatpush1.bf16.msra.mxu0 %v710
        %755 = vmatprep.subr.bf16.mxu0 %v715
        %756 = vmatpush1.bf16.msra.mxu0 %v714
        %757 = vmatprep.subr.bf16.mxu0 %v719
        %758 = vmatpush1.bf16.msra.mxu0 %v718
        %759 = vmatprep.subr.bf16.mxu0 %v745
        %760 = vmatpush1.bf16.msra.mxu0 %v742
        %761 = vmatprep.subr.bf16.mxu0 0
        %762 = vmatpush1.bf16.msra.mxu0 0
        %763 = vmatprep.subr.bf16.mxu0 0
        %764 = vmatpush1.bf16.msra.mxu0 0
        %765 = vmatprep.subr.bf16.mxu0 0
        %766 = vmatpush1.bf16.msra.mxu0 0
        %767 = vmatprep.subr.bf16.mxu0 0
        %768 = vmatpush1.bf16.msra.mxu0 0
        %769 = vmatprep.subr.bf16.mxu0 0
        %770 = vmatpush1.bf16.msra.mxu0 0
        %771 = vmatprep.subr.bf16.mxu0 0
        %772 = vmatpush1.bf16.msra.mxu0 0
        %773 = vmatprep.subr.bf16.mxu0 0
        %774 = vmatpush1.bf16.msra.mxu0 0
        %775 = vmatprep.subr.bf16.mxu0 0
        %776 = vmatpush1.bf16.msra.mxu0 0
        %777 = vmatprep.subr.bf16.mxu0 0
        %778 = vmatpush1.bf16.msra.mxu0 0
        %779 = vmatprep.subr.bf16.mxu0 0
        %780 = vmatpush1.bf16.msra.mxu0 0
        %781 = vmatprep.subr.bf16.mxu0 0
        %782 = vmatpush1.bf16.msra.mxu0 0
        %783 = vmatprep.subr.bf16.mxu0 0
        %784 = vmatpush1.bf16.msra.mxu0 0
        %785 = vmatprep.mubr.bf16.mxu0 0
        %786 = vmatmul.mubr.bf16.gmra.mrb[0].mxu0 %v739
        %v787 = vpop.f32.mrb[0].mxu0
        %v788 = vadd.f32 0.0, %v787
        %v789 = vpop.f32.mrb[0].mxu0
        %v790 = vadd.f32 0.0, %v789
        %v791 = vpop.f32.mrb[0].mxu0
        %v792 = vadd.f32 0.0, %v791
        %v793 = vpop.f32.mrb[0].mxu0
        %v794 = vadd.f32 0.0, %v793
        %795 = vdwg.mxu0
        %796 = vmatprep.subr.bf16.mxu0 %v713
        %797 = vmatpush1.bf16.msra.mxu0 %v712
        %798 = vmatprep.subr.bf16.mxu0 %v717
        %799 = vmatpush1.bf16.msra.mxu0 %v716
        %800 = vmatprep.subr.bf16.mxu0 %v721
        %801 = vmatpush1.bf16.msra.mxu0 %v720
        %802 = vmatprep.subr.bf16.mxu0 %v751
        %803 = vmatpush1.bf16.msra.mxu0 %v748
        %804 = vmatprep.subr.bf16.mxu0 0
        %805 = vmatpush1.bf16.msra.mxu0 0
        %806 = vmatprep.subr.bf16.mxu0 0
        %807 = vmatpush1.bf16.msra.mxu0 0
        %808 = vmatprep.subr.bf16.mxu0 0
        %809 = vmatpush1.bf16.msra.mxu0 0
        %810 = vmatprep.subr.bf16.mxu0 0
        %811 = vmatpush1.bf16.msra.mxu0 0
        %812 = vmatprep.subr.bf16.mxu0 0
        %813 = vmatpush1.bf16.msra.mxu0 0
        %814 = vmatprep.subr.bf16.mxu0 0
        %815 = vmatpush1.bf16.msra.mxu0 0
        %816 = vmatprep.subr.bf16.mxu0 0
        %817 = vmatpush1.bf16.msra.mxu0 0
        %818 = vmatprep.subr.bf16.mxu0 0
        %819 = vmatpush1.bf16.msra.mxu0 0
        %820 = vmatprep.subr.bf16.mxu0 0
        %821 = vmatpush1.bf16.msra.mxu0 0
        %822 = vmatprep.subr.bf16.mxu0 0
        %823 = vmatpush1.bf16.msra.mxu0 0
        %824 = vmatprep.subr.bf16.mxu0 0
        %825 = vmatpush1.bf16.msra.mxu0 0
        %826 = vmatprep.subr.bf16.mxu0 0
        %827 = vmatpush1.bf16.msra.mxu0 0
        %828 = vmatprep.mubr.bf16.mxu0 0
        %829 = vmatmul.mubr.bf16.gmra.mrb[0].mxu0 %v739
        %v830 = vpop.f32.mrb[0].mxu0
        %v831 = vadd.f32 0.0, %v830
        %v832 = vpop.f32.mrb[0].mxu0
        %v833 = vadd.f32 0.0, %v832
        %v834 = vpop.f32.mrb[0].mxu0
        %v835 = vadd.f32 0.0, %v834
        %v836 = vpop.f32.mrb[0].mxu0
        %v837 = vadd.f32 0.0, %v836
        %838 = vdwg.mxu0
        %v839 = vadd.f32 %v594, %v788
        %v840 = vadd.f32 %v596, %v790
        %v841 = vadd.f32 %v637, %v831
        %v842 = vadd.f32 %v639, %v833
        %v843 = vadd.f32 %v598, %v792
        %v844 = vadd.f32 %v600, %v794
        %v845 = vadd.f32 %v641, %v835
        %v846 = vadd.f32 %v643, %v837
        %v847 = vld [vmem:[%s2] sm:$0xf]
        %v849 = vlaneseq
        %v850 = vshrl.u32 %v849, 7
        %v851 = vsub.s32 0, %v850
        %v852 = vrot.slane %v847, %v851
        %v853 = vlaneseq
        %v854 = vshrl.u32 %v853, 7
        %v855 = vsub.s32 1, %v854
        %v856 = vrot.slane %v847, %v855
        %v857 = vlaneseq
        %v858 = vshrl.u32 %v857, 7
        %v859 = vsub.s32 2, %v858
        %v860 = vrot.slane %v847, %v859
        %v861 = vlaneseq
        %v862 = vshrl.u32 %v861, 7
        %v863 = vsub.s32 3, %v862
        %v864 = vrot.slane %v847, %v863
        %v869 = vadd.f32 %v839, %v852
        %v870 = vadd.f32 %v840, %v856
        %v871 = vadd.f32 %v841, %v860
        %v872 = vadd.f32 %v842, %v864
        %v873 = vadd.f32 %v843, %v852
        %v874 = vadd.f32 %v844, %v856
        %v875 = vadd.f32 %v845, %v860
        %v876 = vadd.f32 %v846, %v864
        %v877 = vmax.f32 %v869, 0.0
        %v878 = vmax.f32 %v870, 0.0
        %v879 = vmax.f32 %v871, 0.0
        %v880 = vmax.f32 %v872, 0.0
        %v881 = vmax.f32 %v873, 0.0
        %v882 = vmax.f32 %v874, 0.0
        %v883 = vmax.f32 %v875, 0.0
        %v884 = vmax.f32 %v876, 0.0
        %v885 = vadd.f32 %v877, %v881
        %v886 = vrot.slane %v885, 4
        %v887 = vadd.f32 %v885, %v886
        %v888 = vrot.slane %v887, 2
        %v889 = vadd.f32 %v887, %v888
        %v890 = vrot.slane %v889, 1
        %v891 = vadd.f32 %v889, %v890
        %v892 = vadd.f32 %v878, %v882
        %v893 = vrot.slane %v892, 4
        %v894 = vadd.f32 %v892, %v893
        %v895 = vrot.slane %v894, 2
        %v896 = vadd.f32 %v894, %v895
        %v897 = vrot.slane %v896, 1
        %v898 = vadd.f32 %v896, %v897
        %v899 = vadd.f32 %v879, %v883
        %v900 = vrot.slane %v899, 4
        %v901 = vadd.f32 %v899, %v900
        %v902 = vrot.slane %v901, 2
        %v903 = vadd.f32 %v901, %v902
        %v904 = vrot.slane %v903, 1
        %v905 = vadd.f32 %v903, %v904
        %v906 = vadd.f32 %v880, %v884
        %v907 = vrot.slane %v906, 4
        %v908 = vadd.f32 %v906, %v907
        %v909 = vrot.slane %v908, 2
        %v910 = vadd.f32 %v908, %v909
        %v911 = vrot.slane %v910, 1
        %v912 = vadd.f32 %v910, %v911
        %v913 = vpack.c.bf16 %v891, %v891
        %v914 = vpack.c.bf16 %v898, %v898
        %v915 = vpack.c.bf16 %v905, %v905
        %v916 = vpack.c.bf16 %v912, %v912
        %v917 = vld [vmem:[%s3] sm:$0xf]
        %v918 = vld [vmem:[%s3 + $0x4] sm:$0xf]
        %v919 = vld [vmem:[%s3 + $0x8] sm:$0xf]
        %v920 = vld [vmem:[%s3 + $0xc] sm:$0xf]
        %v921 = vld [vmem:[%s3 + $0x10] sm:$0xf]
        %v922 = vld [vmem:[%s3 + $0x14] sm:$0xf]
        %v923 = vld [vmem:[%s3 + $0x18] sm:$0xf]
        %v924 = vld [vmem:[%s3 + $0x1c] sm:$0xf]
        %v925 = vld [vmem:[%s3 + $0x20] sm:$0xf]
        %v926 = vld [vmem:[%s3 + $0x24] sm:$0xf]
        %v927 = vld [vmem:[%s3 + $0x28] sm:$0xf]
        %v928 = vld [vmem:[%s3 + $0x2c] sm:$0xf]
        %v929 = vld [vmem:[%s3 + $0x30] sm:$0xf]
        %v930 = vld [vmem:[%s3 + $0x34] sm:$0xf]
        %v931 = vld [vmem:[%s3 + $0x38] sm:$0xf]
        %v932 = vld [vmem:[%s3 + $0x3c] sm:$0xf]
        %v933 = vld [vmem:[%s3 + $0x40] sm:$0xf]
        %v934 = vld [vmem:[%s3 + $0x44] sm:$0xf]
        %v935 = vld [vmem:[%s3 + $0x48] sm:$0xf]
        %v936 = vld [vmem:[%s3 + $0x4c] sm:$0xf]
        %v937 = vld [vmem:[%s3 + $0x50] sm:$0xf]
        %v938 = vld [vmem:[%s3 + $0x54] sm:$0xf]
        %v939 = vld [vmem:[%s3 + $0x58] sm:$0xf]
        %v940 = vld [vmem:[%s3 + $0x5c] sm:$0xf]
        %v941 = vld [vmem:[%s3 + $0x60] sm:$0xf]
        %v942 = vld [vmem:[%s3 + $0x64] sm:$0xf]
        %v943 = vld [vmem:[%s3 + $0x68] sm:$0xf]
        %v944 = vld [vmem:[%s3 + $0x6c] sm:$0xf]
        %v945 = vld [vmem:[%s3 + $0x70] sm:$0xf]
        %v946 = vld [vmem:[%s3 + $0x74] sm:$0xf]
        %v947 = vld [vmem:[%s3 + $0x78] sm:$0xf]
        %v948 = vld [vmem:[%s3 + $0x7c] sm:$0xf]
        %v949 = vld [vmem:[%s3 + $0x80] sm:$0xf]
        %v950 = vld [vmem:[%s3 + $0x84] sm:$0xf]
        %v951 = vld [vmem:[%s3 + $0x88] sm:$0xf]
        %v952 = vld [vmem:[%s3 + $0x8c] sm:$0xf]
        %v953 = vld [vmem:[%s3 + $0x90] sm:$0xf]
        %v954 = vld [vmem:[%s3 + $0x94] sm:$0xf]
        %v955 = vld [vmem:[%s3 + $0x98] sm:$0xf]
        %v956 = vld [vmem:[%s3 + $0x9c] sm:$0xf]
        %v957 = vld [vmem:[%s3 + $0xa0] sm:$0xf]
        %v958 = vld [vmem:[%s3 + $0xa4] sm:$0xf]
        %v959 = vld [vmem:[%s3 + $0xa8] sm:$0xf]
        %v960 = vld [vmem:[%s3 + $0xac] sm:$0xf]
        %v961 = vld [vmem:[%s3 + $0xb0] sm:$0xf]
        %v962 = vld [vmem:[%s3 + $0xb4] sm:$0xf]
        %v963 = vld [vmem:[%s3 + $0xb8] sm:$0xf]
        %v964 = vld [vmem:[%s3 + $0xbc] sm:$0xf]
        %v965 = vld [vmem:[%s3 + $0xc0] sm:$0xf]
        %v966 = vld [vmem:[%s3 + $0xc4] sm:$0xf]
        %v967 = vld [vmem:[%s3 + $0xc8] sm:$0xf]
        %v968 = vld [vmem:[%s3 + $0xcc] sm:$0xf]
        %v969 = vld [vmem:[%s3 + $0xd0] sm:$0xf]
        %v970 = vld [vmem:[%s3 + $0xd4] sm:$0xf]
        %v971 = vld [vmem:[%s3 + $0xd8] sm:$0xf]
        %v972 = vld [vmem:[%s3 + $0xdc] sm:$0xf]
        %v973 = vld [vmem:[%s3 + $0xe0] sm:$0xf]
        %v974 = vld [vmem:[%s3 + $0xe4] sm:$0xf]
        %v975 = vld [vmem:[%s3 + $0xe8] sm:$0xf]
        %v976 = vld [vmem:[%s3 + $0xec] sm:$0xf]
        %v977 = vld [vmem:[%s3 + $0xf0] sm:$0xf]
        %v978 = vld [vmem:[%s3 + $0xf4] sm:$0xf]
        %v979 = vld [vmem:[%s3 + $0xf8] sm:$0xf]
        %v980 = vld [vmem:[%s3 + $0xfc] sm:$0xf]
        %v1045 = vunpack.c.l.b16 %v917
        %v1046 = vunpack.c.l.b16 %v918
        %v1047 = vunpack.c.l.b16 %v919
        %v1048 = vunpack.c.l.b16 %v920
        %v1049 = vunpack.c.l.b16 %v921
        %v1050 = vunpack.c.l.b16 %v922
        %v1051 = vunpack.c.l.b16 %v923
        %v1052 = vunpack.c.l.b16 %v924
        %v1053 = vunpack.c.l.b16 %v925
        %v1054 = vunpack.c.l.b16 %v926
        %v1055 = vunpack.c.l.b16 %v927
        %v1056 = vunpack.c.l.b16 %v928
        %v1057 = vunpack.c.l.b16 %v929
        %v1058 = vunpack.c.l.b16 %v930
        %v1059 = vunpack.c.l.b16 %v931
        %v1060 = vunpack.c.l.b16 %v932
        %v1061 = vunpack.c.l.b16 %v933
        %v1062 = vunpack.c.l.b16 %v934
        %v1063 = vunpack.c.l.b16 %v935
        %v1064 = vunpack.c.l.b16 %v936
        %v1065 = vunpack.c.l.b16 %v937
        %v1066 = vunpack.c.l.b16 %v938
        %v1067 = vunpack.c.l.b16 %v939
        %v1068 = vunpack.c.l.b16 %v940
        %v1069 = vunpack.c.l.b16 %v941
        %v1070 = vunpack.c.l.b16 %v942
        %v1071 = vunpack.c.l.b16 %v943
        %v1072 = vunpack.c.l.b16 %v944
        %v1073 = vunpack.c.l.b16 %v945
        %v1074 = vunpack.c.l.b16 %v946
        %v1075 = vunpack.c.l.b16 %v947
        %v1076 = vunpack.c.l.b16 %v948
        %v1077 = vunpack.c.l.b16 %v949
        %v1078 = vunpack.c.l.b16 %v950
        %v1079 = vunpack.c.l.b16 %v951
        %v1080 = vunpack.c.l.b16 %v952
        %v1081 = vunpack.c.l.b16 %v953
        %v1082 = vunpack.c.l.b16 %v954
        %v1083 = vunpack.c.l.b16 %v955
        %v1084 = vunpack.c.l.b16 %v956
        %v1085 = vunpack.c.l.b16 %v957
        %v1086 = vunpack.c.l.b16 %v958
        %v1087 = vunpack.c.l.b16 %v959
        %v1088 = vunpack.c.l.b16 %v960
        %v1089 = vunpack.c.l.b16 %v961
        %v1090 = vunpack.c.l.b16 %v962
        %v1091 = vunpack.c.l.b16 %v963
        %v1092 = vunpack.c.l.b16 %v964
        %v1093 = vunpack.c.l.b16 %v965
        %v1094 = vunpack.c.l.b16 %v966
        %v1095 = vunpack.c.l.b16 %v967
        %v1096 = vunpack.c.l.b16 %v968
        %v1097 = vunpack.c.l.b16 %v969
        %v1098 = vunpack.c.l.b16 %v970
        %v1099 = vunpack.c.l.b16 %v971
        %v1100 = vunpack.c.l.b16 %v972
        %v1101 = vunpack.c.l.b16 %v973
        %v1102 = vunpack.c.l.b16 %v974
        %v1103 = vunpack.c.l.b16 %v975
        %v1104 = vunpack.c.l.b16 %v976
        %v1105 = vunpack.c.l.b16 %v977
        %v1106 = vunpack.c.l.b16 %v978
        %v1107 = vunpack.c.l.b16 %v979
        %v1108 = vunpack.c.l.b16 %v980
        %v1109 = vpack.c.b16 %v1046, %v1045
        %v1110 = vpack.c.b16 %v1048, %v1047
        %v1111 = vpack.c.b16 %v1050, %v1049
        %v1112 = vpack.c.b16 %v1052, %v1051
        %v1113 = vpack.c.b16 %v1054, %v1053
        %v1114 = vpack.c.b16 %v1056, %v1055
        %v1115 = vpack.c.b16 %v1058, %v1057
        %v1116 = vpack.c.b16 %v1060, %v1059
        %v1117 = vpack.c.b16 %v1062, %v1061
        %v1118 = vpack.c.b16 %v1064, %v1063
        %v1119 = vpack.c.b16 %v1066, %v1065
        %v1120 = vpack.c.b16 %v1068, %v1067
        %v1121 = vpack.c.b16 %v1070, %v1069
        %v1122 = vpack.c.b16 %v1072, %v1071
        %v1123 = vpack.c.b16 %v1074, %v1073
        %v1124 = vpack.c.b16 %v1076, %v1075
        %v1125 = vpack.c.b16 %v1078, %v1077
        %v1126 = vpack.c.b16 %v1080, %v1079
        %v1127 = vpack.c.b16 %v1082, %v1081
        %v1128 = vpack.c.b16 %v1084, %v1083
        %v1129 = vpack.c.b16 %v1086, %v1085
        %v1130 = vpack.c.b16 %v1088, %v1087
        %v1131 = vpack.c.b16 %v1090, %v1089
        %v1132 = vpack.c.b16 %v1092, %v1091
        %v1133 = vpack.c.b16 %v1094, %v1093
        %v1134 = vpack.c.b16 %v1096, %v1095
        %v1135 = vpack.c.b16 %v1098, %v1097
        %v1136 = vpack.c.b16 %v1100, %v1099
        %v1137 = vpack.c.b16 %v1102, %v1101
        %v1138 = vpack.c.b16 %v1104, %v1103
        %v1139 = vpack.c.b16 %v1106, %v1105
        %v1140 = vpack.c.b16 %v1108, %v1107
        %1173 = vmatprep.subr.bf16.mxu0 0
        %1174 = vmatpush1.bf16.msra.mxu0 %v1109
        %1175 = vmatprep.subr.bf16.mxu0 0
        %1176 = vmatpush1.bf16.msra.mxu0 %v1110
        %1177 = vmatprep.subr.bf16.mxu0 0
        %1178 = vmatpush1.bf16.msra.mxu0 %v1111
        %1179 = vmatprep.subr.bf16.mxu0 0
        %1180 = vmatpush1.bf16.msra.mxu0 %v1112
        %1181 = vmatprep.subr.bf16.mxu0 0
        %1182 = vmatpush1.bf16.msra.mxu0 %v1113
        %1183 = vmatprep.subr.bf16.mxu0 0
        %1184 = vmatpush1.bf16.msra.mxu0 %v1114
        %1185 = vmatprep.subr.bf16.mxu0 0
        %1186 = vmatpush1.bf16.msra.mxu0 %v1115
        %1187 = vmatprep.subr.bf16.mxu0 0
        %1188 = vmatpush1.bf16.msra.mxu0 %v1116
        %1189 = vmatprep.subr.bf16.mxu0 0
        %1190 = vmatpush1.bf16.msra.mxu0 %v1117
        %1191 = vmatprep.subr.bf16.mxu0 0
        %1192 = vmatpush1.bf16.msra.mxu0 %v1118
        %1193 = vmatprep.subr.bf16.mxu0 0
        %1194 = vmatpush1.bf16.msra.mxu0 %v1119
        %1195 = vmatprep.subr.bf16.mxu0 0
        %1196 = vmatpush1.bf16.msra.mxu0 %v1120
        %1197 = vmatprep.subr.bf16.mxu0 0
        %1198 = vmatpush1.bf16.msra.mxu0 %v1121
        %1199 = vmatprep.subr.bf16.mxu0 0
        %1200 = vmatpush1.bf16.msra.mxu0 %v1122
        %1201 = vmatprep.subr.bf16.mxu0 0
        %1202 = vmatpush1.bf16.msra.mxu0 %v1123
        %1203 = vmatprep.subr.bf16.mxu0 0
        %1204 = vmatpush1.bf16.msra.mxu0 %v1124
        %1205 = vmatprep.mubr.bf16.mxu0 %v914
        %1206 = vmatmul.mubr.bf16.gmra.mrb[0].mxu0 %v913
        %v1207 = vpop.f32.mrb[0].mxu0
        %v1208 = vadd.f32 0.0, %v1207
        %v1209 = vpop.f32.mrb[0].mxu0
        %v1210 = vpop.f32.mrb[0].mxu0
        %v1211 = vpop.f32.mrb[0].mxu0
        %1212 = vdwg.mxu0
        %1213 = vmatprep.subr.bf16.mxu0 0
        %1214 = vmatpush1.bf16.msra.mxu0 %v1125
        %1215 = vmatprep.subr.bf16.mxu0 0
        %1216 = vmatpush1.bf16.msra.mxu0 %v1126
        %1217 = vmatprep.subr.bf16.mxu0 0
        %1218 = vmatpush1.bf16.msra.mxu0 %v1127
        %1219 = vmatprep.subr.bf16.mxu0 0
        %1220 = vmatpush1.bf16.msra.mxu0 %v1128
        %1221 = vmatprep.subr.bf16.mxu0 0
        %1222 = vmatpush1.bf16.msra.mxu0 %v1129
        %1223 = vmatprep.subr.bf16.mxu0 0
        %1224 = vmatpush1.bf16.msra.mxu0 %v1130
        %1225 = vmatprep.subr.bf16.mxu0 0
        %1226 = vmatpush1.bf16.msra.mxu0 %v1131
        %1227 = vmatprep.subr.bf16.mxu0 0
        %1228 = vmatpush1.bf16.msra.mxu0 %v1132
        %1229 = vmatprep.subr.bf16.mxu0 0
        %1230 = vmatpush1.bf16.msra.mxu0 %v1133
        %1231 = vmatprep.subr.bf16.mxu0 0
        %1232 = vmatpush1.bf16.msra.mxu0 %v1134
        %1233 = vmatprep.subr.bf16.mxu0 0
        %1234 = vmatpush1.bf16.msra.mxu0 %v1135
        %1235 = vmatprep.subr.bf16.mxu0 0
        %1236 = vmatpush1.bf16.msra.mxu0 %v1136
        %1237 = vmatprep.subr.bf16.mxu0 0
        %1238 = vmatpush1.bf16.msra.mxu0 %v1137
        %1239 = vmatprep.subr.bf16.mxu0 0
        %1240 = vmatpush1.bf16.msra.mxu0 %v1138
        %1241 = vmatprep.subr.bf16.mxu0 0
        %1242 = vmatpush1.bf16.msra.mxu0 %v1139
        %1243 = vmatprep.subr.bf16.mxu0 0
        %1244 = vmatpush1.bf16.msra.mxu0 %v1140
        %1245 = vmatprep.mubr.bf16.mxu0 %v916
        %1246 = vmatmul.mubr.bf16.gmra.mrb[0].mxu0 %v915
        %v1247 = vpop.f32.mrb[0].mxu0
        %v1248 = vadd.f32 %v1208, %v1247
        %v1249 = vpop.f32.mrb[0].mxu0
        %v1250 = vpop.f32.mrb[0].mxu0
        %v1251 = vpop.f32.mrb[0].mxu0
        %1252 = vdwg.mxu0
        %v1253 = vpack.c.bf16 %v1248, %v1248
        %vm1254 = vcmask 253952
        %vm1255 = vsmask.f32 256
        %vm1256 = vmand %vm1254, %vm1255
        %v1257 = vld [vmem:[%s255] sm:$0x1]
        %v1258 = vsel %vm1256, %v1253, %v1257
        %1259 = vst [vmem:[%s255] sm:$0x1] %v1258
        %p1260 = scmp.lt.s32.totalorder %s15, 7
        %s1261 = scalar_select %p1260, %s15, 7
        %s1262 = scalar_lea.vmem %s4, %s1261
        // Predicated region
        $region78: #{image_learned_prior_forward.3} parent=72 // pred_check
          %p1263 = pneg %p122
        $region79: #{image_learned_prior_forward.3} parent=72 // pred_check_branch
          %1265 = sbr.rel (%p1263) target = $region81
        $region80: #{image_learned_prior_forward.3} parent=72 // pred_region
          _
        $region81: #{image_learned_prior_forward.3} parent=72 // pred_fallthru
          _
      $region73: #{image_learned_prior_forward.3} parent=5 // pred_fallthru
        _
      %p1266 = scmp.le.s32.totalorder 2, %s10
      // Predicated region
      $region82: #{image_learned_prior_forward.3} parent=5 // pred_check
        %p1267 = pneg %p1266
      $region83: #{image_learned_prior_forward.3} parent=5 // pred_check_branch
        %1269 = sbr.rel (%p1267) target = $region85
      $region84: #{image_learned_prior_forward.3} parent=5 // pred_region
        %s1270 = ssub.s32 %s10, 2
        // Predicated region
        $region86: #{image_learned_prior_forward.3} parent=84 // pred_check
          %p1271 = pneg %p128
        $region87: #{image_learned_prior_forward.3} parent=84 // pred_check_branch
          %1273 = sbr.rel (%p1271) target = $region89
        $region88: #{image_learned_prior_forward.3} parent=84 // pred_region
          %p1274 = scmp.lt.s32.totalorder %s16, 7
          %s1275 = scalar_select %p1274, %s16, 7
          %s1276 = scalar_lea.vmem %s4, %s1275
        $region89: #{image_learned_prior_forward.3} parent=84 // pred_fallthru
          _
      $region85: #{image_learned_prior_forward.3} parent=5 // pred_fallthru
        _
    $region6: #{image_learned_prior_forward.3} parent=1 // loop_footer
      %s14 = sadd.s32 1, %s10
    $region7: #{image_learned_prior_forward.3} parent=1 // loop_footer_branch
      %9 = sbr.rel target = $region3
    $region8: #{image_learned_prior_forward.3} parent=1 // loop_exit
      _

</llo_original>
